<compile_context>
chip_gen: v5e
topology: v5e:2x2
jax: 0.10.0
libtpu: 0.0.40
codegen_flags: <defaults>
</compile_context>

<pallas_src>
import functools

import jax
import jax.numpy as jnp
from jax.experimental import pallas as pl
from jax.experimental.pallas import tpu as pltpu


# ----------------------------------------------------------------------------
# Pallas kernel: all message-passing iterations fused into one call.
# ----------------------------------------------------------------------------
def gcn_fused_kernel(v0_ref, c0_ref,
                     p_adj_ref, n_adj_ref, p_adj_t_ref, n_adj_t_ref,
                     w1_v_ref, b1_v_ref, w2_v_ref, b2_v_ref,
                     w1_c_ref, b1_c_ref, w2_c_ref, b2_c_ref,
                     cu_w_ref, cu_b_ref, vu_w_ref, vu_b_ref,
                     v_hist_ref, c_hist_ref,
                     v_state, c_state, cat_v, cat_c):
    it = pl.program_id(0)
    dp = v_state.shape[1]                     # padded feature dim (128-multiple)
    f32, bf16 = jnp.float32, jnp.bfloat16

    # Initialize the carried embedding state on the first iteration only.
    @pl.when(it == 0)
    def _():
        v_state[...] = v0_ref[...]
        c_state[...] = c0_ref[...]

    v_emb = v_state[...]                      # [V, Dp] f32 (old embeddings)
    c_emb = c_state[...]                      # [C, Dp] f32

    # --- fused 2-layer message MLPs (p/n pairs share their input) -----------
    # first layers fused: [*, Dp] @ [Dp, 2Dp]; second layers block-diagonal.
    h_v = jnp.maximum(
        jnp.dot(v_emb.astype(bf16), w1_v_ref[...],
                preferred_element_type=f32) + b1_v_ref[...], 0.0)
    msg_v = jnp.dot(h_v.astype(bf16), w2_v_ref[...],
                    preferred_element_type=f32) + b2_v_ref[...]   # [V, 2Dp]

    h_c = jnp.maximum(
        jnp.dot(c_emb.astype(bf16), w1_c_ref[...],
                preferred_element_type=f32) + b1_c_ref[...], 0.0)
    msg_c = jnp.dot(h_c.astype(bf16), w2_c_ref[...],
                    preferred_element_type=f32) + b2_c_ref[...]   # [C, 2Dp]

    p_msg_v = msg_v[:, :dp].astype(bf16)      # p_v2c message features
    n_msg_v = msg_v[:, dp:].astype(bf16)      # n_v2c message features
    p_msg_c = msg_c[:, :dp].astype(bf16)      # p_c2v message features
    n_msg_c = msg_c[:, dp:].astype(bf16)      # n_c2v message features

    # --- normalized scatter_sum == dense normalized-adjacency matmul --------
    p_v2c = jnp.dot(p_adj_ref[...], p_msg_v, preferred_element_type=f32)   # [C, Dp]
    n_v2c = jnp.dot(n_adj_ref[...], n_msg_v, preferred_element_type=f32)   # [C, Dp]
    p_c2v = jnp.dot(p_adj_t_ref[...], p_msg_c, preferred_element_type=f32)  # [V, Dp]
    n_c2v = jnp.dot(n_adj_t_ref[...], n_msg_c, preferred_element_type=f32)  # [V, Dp]

    # --- updates: contiguous [*, 3Dp] scratch -> single matmul each ---------
    cat_c[:, 0:dp] = c_emb.astype(bf16)
    cat_c[:, dp:2 * dp] = p_v2c.astype(bf16)
    cat_c[:, 2 * dp:3 * dp] = n_v2c.astype(bf16)
    c_new = jnp.dot(cat_c[...], cu_w_ref[...],
                    preferred_element_type=f32) + cu_b_ref[...]

    cat_v[:, 0:dp] = v_emb.astype(bf16)
    cat_v[:, dp:2 * dp] = p_c2v.astype(bf16)
    cat_v[:, 2 * dp:3 * dp] = n_c2v.astype(bf16)
    v_new = jnp.dot(cat_v[...], vu_w_ref[...],
                    preferred_element_type=f32) + vu_b_ref[...]

    # Carry the state and emit this iteration's (lane-dense) history slice.
    c_state[...] = c_new
    v_state[...] = v_new
    c_hist_ref[...] = c_new
    v_hist_ref[...] = v_new


def _resident_spec(shape):
    """Full-array block whose index never changes -> DMA'd to VMEM once."""
    zeros = (0,) * len(shape)
    return pl.BlockSpec(shape, lambda i, _z=zeros: _z)


def _run_iterations(v0, c0, p_adj, n_adj, p_adj_t, n_adj_t, w, n_iterations):
    V, DP = v0.shape
    C = c0.shape[0]

    inputs = (v0, c0, p_adj, n_adj, p_adj_t, n_adj_t,
              w["w1_v"], w["b1_v"], w["w2_v"], w["b2_v"],
              w["w1_c"], w["b1_c"], w["w2_c"], w["b2_c"],
              w["cu_w"], w["cu_b"], w["vu_w"], w["vu_b"])

    grid_spec = pltpu.PrefetchScalarGridSpec(
        num_scalar_prefetch=0,
        grid=(n_iterations,),
        in_specs=[_resident_spec(x.shape) for x in inputs],
        out_specs=(pl.BlockSpec((None, V, DP), lambda i: (i, 0, 0)),
                   pl.BlockSpec((None, C, DP), lambda i: (i, 0, 0))),
        scratch_shapes=[pltpu.VMEM((V, DP), jnp.float32),       # carried v_emb
                        pltpu.VMEM((C, DP), jnp.float32),       # carried c_emb
                        pltpu.VMEM((V, 3 * DP), jnp.bfloat16),  # v-update concat
                        pltpu.VMEM((C, 3 * DP), jnp.bfloat16)],  # c-update concat
    )
    call = pl.pallas_call(
        gcn_fused_kernel,
        out_shape=(jax.ShapeDtypeStruct((n_iterations, V, DP), jnp.float32),
                   jax.ShapeDtypeStruct((n_iterations, C, DP), jnp.float32)),
        grid_spec=grid_spec,
        compiler_params=pltpu.CompilerParams(
            dimension_semantics=("arbitrary",),      # sequential: state carries
            vmem_limit_bytes=64 * 1024 * 1024),      # above 16/32 MiB defaults
    )
    return call(*inputs)


# ----------------------------------------------------------------------------
# Weight packing: pad to lane-dense Dp, fuse MLP pairs, bf16 MXU operands.
# ----------------------------------------------------------------------------
def _pad2(x, rows, cols):
    return jnp.zeros((rows, cols), x.dtype).at[:x.shape[0], :x.shape[1]].set(x)


def _pack_weights(params, dim, dp):
    mlp_w, mlp_b = params["mlp_w"], params["mlp_b"]
    bf16 = jnp.bfloat16

    def fuse_pair(i0, i1):
        # First layers of the two MLPs sharing an input -> one [dp, 2dp] weight.
        w1 = jnp.concatenate([_pad2(mlp_w[i0, 0], dp, dp),
                              _pad2(mlp_w[i1, 0], dp, dp)], axis=1)
        b1 = jnp.concatenate([_pad2(mlp_b[i0, 0], 1, dp),
                              _pad2(mlp_b[i1, 0], 1, dp)], axis=1)
        # Second layers -> one block-diagonal [2dp, 2dp] weight.
        w2 = (jnp.zeros((2 * dp, 2 * dp), jnp.float32)
              .at[:dim, :dim].set(mlp_w[i0, 1])
              .at[dp:dp + dim, dp:dp + dim].set(mlp_w[i1, 1]))
        b2 = jnp.concatenate([_pad2(mlp_b[i0, 1], 1, dp),
                              _pad2(mlp_b[i1, 1], 1, dp)], axis=1)
        return w1.astype(bf16), b1, w2.astype(bf16), b2

    w1_v, b1_v, w2_v, b2_v = fuse_pair(0, 1)   # p_v2c / n_v2c (input v_emb)
    w1_c, b1_c, w2_c, b2_c = fuse_pair(2, 3)   # p_c2v / n_c2v (input c_emb)

    def pack_update(blocks):                   # [3, dim, dim] -> [3dp, dp]
        return jnp.concatenate([_pad2(blocks[i], dp, dp) for i in range(3)],
                               axis=0).astype(bf16)

    return dict(w1_v=w1_v, b1_v=b1_v, w2_v=w2_v, b2_v=b2_v,
                w1_c=w1_c, b1_c=b1_c, w2_c=w2_c, b2_c=b2_c,
                cu_w=pack_update(params["cu_w"]),
                cu_b=_pad2(params["cu_b"], 1, dp),
                vu_w=pack_update(params["vu_w"]),
                vu_b=_pad2(params["vu_b"], 1, dp))


# ----------------------------------------------------------------------------
# Normalized adjacency construction (one-time, data-dependent setup in JAX).
# ----------------------------------------------------------------------------
def build_norm_adj(v_size, c_size, v_edge_index, c_edge_index, edge_sel):
    v_idx = v_edge_index[edge_sel]
    c_idx = c_edge_index[edge_sel]
    v_deg = jnp.maximum(jnp.zeros((v_size,), jnp.float32).at[v_idx].add(1.0), 1.0)
    c_deg = jnp.maximum(jnp.zeros((c_size,), jnp.float32).at[c_idx].add(1.0), 1.0)
    norm = jnp.sqrt(v_deg[v_idx]) * jnp.sqrt(c_deg[c_idx])      # per-edge norm
    return jnp.zeros((c_size, v_size), jnp.float32).at[c_idx, v_idx].add(1.0 / norm)


@functools.partial(jax.jit, static_argnames=("v_size", "c_size", "n_iterations"))
def _gcn_vcg_jit(v_edge_index, c_edge_index, p_edge_index, n_edge_index,
                 v_emb, c_emb, params, *, v_size, c_size, n_iterations):
    dim = v_emb.shape[1]
    dp = max(128, ((dim + 127) // 128) * 128)   # lane-dense padded feature dim

    p_adj = build_norm_adj(v_size, c_size, v_edge_index, c_edge_index, p_edge_index)
    n_adj = build_norm_adj(v_size, c_size, v_edge_index, c_edge_index, n_edge_index)
    # bf16 MXU operands; transposes pre-materialized once (no per-iter xpose).
    p_adj_bf = p_adj.astype(jnp.bfloat16)
    n_adj_bf = n_adj.astype(jnp.bfloat16)
    p_adj_t = p_adj.T.astype(jnp.bfloat16)
    n_adj_t = n_adj.T.astype(jnp.bfloat16)

    w = _pack_weights(params, dim, dp)
    v0 = _pad2(v_emb.astype(jnp.float32), v_size, dp)
    c0 = _pad2(c_emb.astype(jnp.float32), c_size, dp)

    v_hist, c_hist = _run_iterations(v0, c0, p_adj_bf, n_adj_bf, p_adj_t, n_adj_t,
                                     w, n_iterations)
    return v_hist[:, :, :dim], c_hist[:, :, :dim]


def gcn_vcg_forward(v_size, c_size, v_edge_index, c_edge_index,
                    p_edge_index, n_edge_index, v_emb, c_emb,
                    params, n_iterations):
    if n_iterations == 0:
        return [v_emb], [c_emb]
    v_hist, c_hist = _gcn_vcg_jit(
        v_edge_index, c_edge_index, p_edge_index, n_edge_index,
        v_emb, c_emb, params,
        v_size=v_size, c_size=c_size, n_iterations=n_iterations)
    v_embs = [v_emb] + [v_hist[i] for i in range(n_iterations)]
    c_embs = [c_emb] + [c_hist[i] for i in range(n_iterations)]
    return v_embs, c_embs


# ----------------------------------------------------------------------------
# Deterministic parameter initialization (PyTorch-Linear-style uniform bounds).
# ----------------------------------------------------------------------------
def init_params(key, dim):
    keys = jax.random.split(key, 8)

    def lin(k, fan_in, fan_out):
        bound = 1.0 / jnp.sqrt(fan_in)
        kw, kb = jax.random.split(k)
        # stored as [in, out] (i.e. PyTorch weight transposed) for x @ W
        w = jax.random.uniform(kw, (fan_in, fan_out), jnp.float32, -bound, bound)
        b = jax.random.uniform(kb, (1, fan_out), jnp.float32, -bound, bound)
        return w, b

    # 4 MLPs (p_v2c, n_v2c, p_c2v, n_c2v), each 2 layers of [dim, dim]
    mlp_w, mlp_b = [], []
    for i in range(4):
        ws, bs = [], []
        for l in range(2):
            w, b = lin(jax.random.fold_in(keys[i], l), dim, dim)
            ws.append(w)
            bs.append(b)
        mlp_w.append(jnp.stack(ws))
        mlp_b.append(jnp.stack(bs))
    mlp_w = jnp.stack(mlp_w)                     # [4, 2, dim, dim]
    mlp_b = jnp.stack(mlp_b)                     # [4, 2, 1, dim]

    # c_update / v_update: Linear(3*dim, dim), split into 3 blocks of [dim, dim]
    cu_w_full, cu_b = lin(keys[4], 3 * dim, dim)
    vu_w_full, vu_b = lin(keys[5], 3 * dim, dim)
    cu_w = jnp.stack([cu_w_full[i * dim:(i + 1) * dim] for i in range(3)])
    vu_w = jnp.stack([vu_w_full[i * dim:(i + 1) * dim] for i in range(3)])

    return dict(mlp_w=mlp_w, mlp_b=mlp_b,
                cu_w=cu_w, cu_b=cu_b, vu_w=vu_w, vu_b=vu_b)


# ----------------------------------------------------------------------------
# Pure-JAX edge-based port of the PyTorch forward (correctness reference).
# ----------------------------------------------------------------------------
def _mlp_ref(x, w, b):
    h = jnp.maximum(jnp.dot(x, w[0]) + b[0], 0.0)
    return jnp.dot(h, w[1]) + b[1]


def gcn_vcg_reference(v_size, c_size, v_edge_index, c_edge_index,
                      p_edge_index, n_edge_index, v_emb, c_emb,
                      params, n_iterations):
    D = v_emb.shape[1]
    v_p, c_p = v_edge_index[p_edge_index], c_edge_index[p_edge_index]
    v_n, c_n = v_edge_index[n_edge_index], c_edge_index[n_edge_index]

    def deg(idx, size):
        return jnp.maximum(jnp.zeros((size,), jnp.float32).at[idx].add(1.0), 1.0)

    p_norm = (jnp.sqrt(deg(v_p, v_size)[v_p]) * jnp.sqrt(deg(c_p, c_size)[c_p]))[:, None]
    n_norm = (jnp.sqrt(deg(v_n, v_size)[v_n]) * jnp.sqrt(deg(c_n, c_size)[c_n]))[:, None]

    mlp_w, mlp_b = params["mlp_w"], params["mlp_b"]
    cu_w = jnp.concatenate([params["cu_w"][i] for i in range(3)], axis=0)  # [3D, D]
    vu_w = jnp.concatenate([params["vu_w"][i] for i in range(3)], axis=0)

    v_embs, c_embs = [v_emb], [c_emb]
    for _ in range(n_iterations):
        p_v2c = jnp.zeros((c_size, D), jnp.float32).at[c_p].add(
            _mlp_ref(v_emb, mlp_w[0], mlp_b[0])[v_p] / p_norm)
        n_v2c = jnp.zeros((c_size, D), jnp.float32).at[c_n].add(
            _mlp_ref(v_emb, mlp_w[1], mlp_b[1])[v_n] / n_norm)
        p_c2v = jnp.zeros((v_size, D), jnp.float32).at[v_p].add(
            _mlp_ref(c_emb, mlp_w[2], mlp_b[2])[c_p] / p_norm)
        n_c2v = jnp.zeros((v_size, D), jnp.float32).at[v_n].add(
            _mlp_ref(c_emb, mlp_w[3], mlp_b[3])[c_n] / n_norm)
        c_new = jnp.concatenate([c_emb, p_v2c, n_v2c], 1) @ cu_w + params["cu_b"]
        v_new = jnp.concatenate([v_emb, p_c2v, n_c2v], 1) @ vu_w + params["vu_b"]
        c_emb, v_emb = c_new, v_new
        c_embs.append(c_emb)
        v_embs.append(v_emb)
    return v_embs, c_embs


if __name__ == "__main__":
    key = jax.random.PRNGKey(0)
    dim = 32
    v_size = 24          # number of variable nodes
    c_size = 16          # number of clause nodes
    n_edges = 40         # literal-clause edges
    n_iterations = 3

    k_emb_v, k_emb_c, k_ve, k_ce, k_param = jax.random.split(key, 5)
    v_emb = jax.random.normal(k_emb_v, (v_size, dim), jnp.float32)
    c_emb = jax.random.normal(k_emb_c, (c_size, dim), jnp.float32)
    v_edge_index = jax.random.randint(k_ve, (n_edges,), 0, v_size)
    c_edge_index = jax.random.randint(k_ce, (n_edges,), 0, c_size)
    p_edge_index = jnp.arange(0, n_edges, 2)     # positive-polarity edges
    n_edge_index = jnp.arange(1, n_edges, 2)     # negative-polarity edges

    params = init_params(k_param, dim)

    v_embs, c_embs = gcn_vcg_forward(
        v_size, c_size, v_edge_index, c_edge_index,
        p_edge_index, n_edge_index, v_emb, c_emb,
        params, n_iterations)

    jax.block_until_ready(v_embs[-1])
    jax.block_until_ready(c_embs[-1])
    assert len(v_embs) == n_iterations + 1 and len(c_embs) == n_iterations + 1
    assert v_embs[-1].shape == (v_size, dim) and c_embs[-1].shape == (c_size, dim)

    # Tolerance check vs. an edge-based pure-JAX f32 port of the PyTorch
    # forward.  The kernel uses bf16 MXU inputs (f32 accumulation), so the
    # tolerance is relaxed accordingly.
    v_ref, c_ref = gcn_vcg_reference(
        v_size, c_size, v_edge_index, c_edge_index,
        p_edge_index, n_edge_index, v_emb, c_emb,
        params, n_iterations)
    for a, b in zip(v_embs, v_ref):
        assert float(jnp.max(jnp.abs(a - b))) < 1e-1
    for a, b in zip(c_embs, c_ref):
        assert float(jnp.max(jnp.abs(a - b))) < 1e-1

    print("KERNEL_OK")
</pallas_src>

<mosaic_0001>
module attributes {stable_mosaic.version = 11 : i64} {
  func.func @gcn_fused_kernel(%arg0: i32, %arg1: memref<24x128xf32, #tpu.memory_space<vmem>>, %arg2: memref<16x128xf32, #tpu.memory_space<vmem>>, %arg3: memref<16x24xbf16, #tpu.memory_space<vmem>>, %arg4: memref<16x24xbf16, #tpu.memory_space<vmem>>, %arg5: memref<24x16xbf16, #tpu.memory_space<vmem>>, %arg6: memref<24x16xbf16, #tpu.memory_space<vmem>>, %arg7: memref<128x256xbf16, #tpu.memory_space<vmem>>, %arg8: memref<1x256xf32, #tpu.memory_space<vmem>>, %arg9: memref<256x256xbf16, #tpu.memory_space<vmem>>, %arg10: memref<1x256xf32, #tpu.memory_space<vmem>>, %arg11: memref<128x256xbf16, #tpu.memory_space<vmem>>, %arg12: memref<1x256xf32, #tpu.memory_space<vmem>>, %arg13: memref<256x256xbf16, #tpu.memory_space<vmem>>, %arg14: memref<1x256xf32, #tpu.memory_space<vmem>>, %arg15: memref<384x128xbf16, #tpu.memory_space<vmem>>, %arg16: memref<1x128xf32, #tpu.memory_space<vmem>>, %arg17: memref<384x128xbf16, #tpu.memory_space<vmem>>, %arg18: memref<1x128xf32, #tpu.memory_space<vmem>>, %arg19: memref<1x24x128xf32, #tpu.memory_space<vmem>>, %arg20: memref<1x16x128xf32, #tpu.memory_space<vmem>>, %arg21: memref<24x128xf32, #tpu.memory_space<vmem>>, %arg22: memref<16x128xf32, #tpu.memory_space<vmem>>, %arg23: memref<24x384xbf16, #tpu.memory_space<vmem>>, %arg24: memref<16x384xbf16, #tpu.memory_space<vmem>>) attributes {dimension_semantics = [#tpu.dimension_semantics<arbitrary>], iteration_bounds = array<i64: 3>, scalar_prefetch = 0 : i64, scratch_operands = 4 : i64, tpu.core_type = #tpu.core_type<tc>, window_params = [{pipeline_mode = #tpu.pipeline_mode<synchronous>, transform_indices = @transform_0, window_bounds = array<i64: 24, 128>}, {pipeline_mode = #tpu.pipeline_mode<synchronous>, transform_indices = @transform_1, window_bounds = array<i64: 16, 128>}, {pipeline_mode = #tpu.pipeline_mode<synchronous>, transform_indices = @transform_2, window_bounds = array<i64: 16, 24>}, {pipeline_mode = #tpu.pipeline_mode<synchronous>, transform_indices = @transform_3, window_bounds = array<i64: 16, 24>}, {pipeline_mode = #tpu.pipeline_mode<synchronous>, transform_indices = @transform_4, window_bounds = array<i64: 24, 16>}, {pipeline_mode = #tpu.pipeline_mode<synchronous>, transform_indices = @transform_5, window_bounds = array<i64: 24, 16>}, {pipeline_mode = #tpu.pipeline_mode<synchronous>, transform_indices = @transform_6, window_bounds = array<i64: 128, 256>}, {pipeline_mode = #tpu.pipeline_mode<synchronous>, transform_indices = @transform_7, window_bounds = array<i64: 1, 256>}, {pipeline_mode = #tpu.pipeline_mode<synchronous>, transform_indices = @transform_8, window_bounds = array<i64: 256, 256>}, {pipeline_mode = #tpu.pipeline_mode<synchronous>, transform_indices = @transform_9, window_bounds = array<i64: 1, 256>}, {pipeline_mode = #tpu.pipeline_mode<synchronous>, transform_indices = @transform_10, window_bounds = array<i64: 128, 256>}, {pipeline_mode = #tpu.pipeline_mode<synchronous>, transform_indices = @transform_11, window_bounds = array<i64: 1, 256>}, {pipeline_mode = #tpu.pipeline_mode<synchronous>, transform_indices = @transform_12, window_bounds = array<i64: 256, 256>}, {pipeline_mode = #tpu.pipeline_mode<synchronous>, transform_indices = @transform_13, window_bounds = array<i64: 1, 256>}, {pipeline_mode = #tpu.pipeline_mode<synchronous>, transform_indices = @transform_14, window_bounds = array<i64: 384, 128>}, {pipeline_mode = #tpu.pipeline_mode<synchronous>, transform_indices = @transform_15, window_bounds = array<i64: 1, 128>}, {pipeline_mode = #tpu.pipeline_mode<synchronous>, transform_indices = @transform_16, window_bounds = array<i64: 384, 128>}, {pipeline_mode = #tpu.pipeline_mode<synchronous>, transform_indices = @transform_17, window_bounds = array<i64: 1, 128>}, {transform_indices = @transform_18, window_bounds = array<i64: 1, 24, 128>}, {transform_indices = @transform_19, window_bounds = array<i64: 1, 16, 128>}]} {
    %c0_i32 = arith.constant 0 : i32
    %0 = arith.cmpi eq, %arg0, %c0_i32 : i32
    %1 = arith.extui %0 : i1 to i32
    %c0_i32_0 = arith.constant 0 : i32
    %2 = arith.cmpi ne, %1, %c0_i32_0 : i32
    scf.if %2 {
      %c0_71 = arith.constant 0 : index
      %c0_72 = arith.constant 0 : index
      %81 = vector.load %arg1[%c0_71, %c0_72] : memref<24x128xf32, #tpu.memory_space<vmem>>, vector<24x128xf32>
      %c0_73 = arith.constant 0 : index
      %c0_74 = arith.constant 0 : index
      %82 = vector.load %arg21[%c0_73, %c0_74] : memref<24x128xf32, #tpu.memory_space<vmem>>, vector<24x128xf32>
      tpu.vector_store %arg21[%c0_73, %c0_74], %81 {strides = array<i32>} : memref<24x128xf32, #tpu.memory_space<vmem>>, vector<24x128xf32>,
      %c0_75 = arith.constant 0 : index
      %c0_76 = arith.constant 0 : index
      %83 = vector.load %arg2[%c0_75, %c0_76] : memref<16x128xf32, #tpu.memory_space<vmem>>, vector<16x128xf32>
      %c0_77 = arith.constant 0 : index
      %c0_78 = arith.constant 0 : index
      %84 = vector.load %arg22[%c0_77, %c0_78] : memref<16x128xf32, #tpu.memory_space<vmem>>, vector<16x128xf32>
      tpu.vector_store %arg22[%c0_77, %c0_78], %83 {strides = array<i32>} : memref<16x128xf32, #tpu.memory_space<vmem>>, vector<16x128xf32>,
    } else {
    }
    %c0 = arith.constant 0 : index
    %c0_1 = arith.constant 0 : index
    %3 = vector.load %arg21[%c0, %c0_1] : memref<24x128xf32, #tpu.memory_space<vmem>>, vector<24x128xf32>
    %c0_2 = arith.constant 0 : index
    %c0_3 = arith.constant 0 : index
    %4 = vector.load %arg22[%c0_2, %c0_3] : memref<16x128xf32, #tpu.memory_space<vmem>>, vector<16x128xf32>
    %5 = arith.truncf %3 : vector<24x128xf32> to vector<24x128xbf16>
    %c0_4 = arith.constant 0 : index
    %c0_5 = arith.constant 0 : index
    %6 = vector.load %arg7[%c0_4, %c0_5] : memref<128x256xbf16, #tpu.memory_space<vmem>>, vector<128x256xbf16>
    %cst = arith.constant dense<0.000000e+00> : vector<24x256xf32>
    %7 = tpu.matmul %5, %6, %cst {dimension_numbers = #tpu.dot_dimension_numbers<[1], [0], [0], [1], [0, 0, 1, 1], [], []>} : vector<24x128xbf16>, vector<128x256xbf16>, vector<24x256xf32> -> vector<24x256xf32>
    %c0_6 = arith.constant 0 : index
    %c0_7 = arith.constant 0 : index
    %8 = vector.load %arg8[%c0_6, %c0_7] : memref<1x256xf32, #tpu.memory_space<vmem>>, vector<1x256xf32>
    %9 = vector.broadcast %8 : vector<1x256xf32> to vector<24x256xf32>
    %10 = arith.addf %7, %9 : vector<24x256xf32>
    %cst_8 = arith.constant 0.000000e+00 : f32
    %11 = vector.broadcast %cst_8 : f32 to vector<24x256xf32>
    %12 = arith.maximumf %10, %11 : vector<24x256xf32>
    %13 = arith.truncf %12 : vector<24x256xf32> to vector<24x256xbf16>
    %c0_9 = arith.constant 0 : index
    %c0_10 = arith.constant 0 : index
    %14 = vector.load %arg9[%c0_9, %c0_10] : memref<256x256xbf16, #tpu.memory_space<vmem>>, vector<256x256xbf16>
    %cst_11 = arith.constant dense<0.000000e+00> : vector<24x256xf32>
    %15 = tpu.matmul %13, %14, %cst_11 {dimension_numbers = #tpu.dot_dimension_numbers<[1], [0], [0], [1], [0, 0, 1, 1], [], []>} : vector<24x256xbf16>, vector<256x256xbf16>, vector<24x256xf32> -> vector<24x256xf32>
    %c0_12 = arith.constant 0 : index
    %c0_13 = arith.constant 0 : index
    %16 = vector.load %arg10[%c0_12, %c0_13] : memref<1x256xf32, #tpu.memory_space<vmem>>, vector<1x256xf32>
    %17 = vector.broadcast %16 : vector<1x256xf32> to vector<24x256xf32>
    %18 = arith.addf %15, %17 : vector<24x256xf32>
    %19 = arith.truncf %4 : vector<16x128xf32> to vector<16x128xbf16>
    %c0_14 = arith.constant 0 : index
    %c0_15 = arith.constant 0 : index
    %20 = vector.load %arg11[%c0_14, %c0_15] : memref<128x256xbf16, #tpu.memory_space<vmem>>, vector<128x256xbf16>
    %cst_16 = arith.constant dense<0.000000e+00> : vector<16x256xf32>
    %21 = tpu.matmul %19, %20, %cst_16 {dimension_numbers = #tpu.dot_dimension_numbers<[1], [0], [0], [1], [0, 0, 1, 1], [], []>} : vector<16x128xbf16>, vector<128x256xbf16>, vector<16x256xf32> -> vector<16x256xf32>
    %c0_17 = arith.constant 0 : index
    %c0_18 = arith.constant 0 : index
    %22 = vector.load %arg12[%c0_17, %c0_18] : memref<1x256xf32, #tpu.memory_space<vmem>>, vector<1x256xf32>
    %23 = vector.broadcast %22 : vector<1x256xf32> to vector<16x256xf32>
    %24 = arith.addf %21, %23 : vector<16x256xf32>
    %cst_19 = arith.constant 0.000000e+00 : f32
    %25 = vector.broadcast %cst_19 : f32 to vector<16x256xf32>
    %26 = arith.maximumf %24, %25 : vector<16x256xf32>
    %27 = arith.truncf %26 : vector<16x256xf32> to vector<16x256xbf16>
    %c0_20 = arith.constant 0 : index
    %c0_21 = arith.constant 0 : index
    %28 = vector.load %arg13[%c0_20, %c0_21] : memref<256x256xbf16, #tpu.memory_space<vmem>>, vector<256x256xbf16>
    %cst_22 = arith.constant dense<0.000000e+00> : vector<16x256xf32>
    %29 = tpu.matmul %27, %28, %cst_22 {dimension_numbers = #tpu.dot_dimension_numbers<[1], [0], [0], [1], [0, 0, 1, 1], [], []>} : vector<16x256xbf16>, vector<256x256xbf16>, vector<16x256xf32> -> vector<16x256xf32>
    %c0_23 = arith.constant 0 : index
    %c0_24 = arith.constant 0 : index
    %30 = vector.load %arg14[%c0_23, %c0_24] : memref<1x256xf32, #tpu.memory_space<vmem>>, vector<1x256xf32>
    %31 = vector.broadcast %30 : vector<1x256xf32> to vector<16x256xf32>
    %32 = arith.addf %29, %31 : vector<16x256xf32>
    %33 = vector.extract_strided_slice %18 {offsets = [0, 0], sizes = [24, 128], strides = [1, 1]} : vector<24x256xf32> to vector<24x128xf32>
    %34 = arith.truncf %33 : vector<24x128xf32> to vector<24x128xbf16>
    %35 = vector.extract_strided_slice %18 {offsets = [0, 128], sizes = [24, 128], strides = [1, 1]} : vector<24x256xf32> to vector<24x128xf32>
    %36 = arith.truncf %35 : vector<24x128xf32> to vector<24x128xbf16>
    %37 = vector.extract_strided_slice %32 {offsets = [0, 0], sizes = [16, 128], strides = [1, 1]} : vector<16x256xf32> to vector<16x128xf32>
    %38 = arith.truncf %37 : vector<16x128xf32> to vector<16x128xbf16>
    %39 = vector.extract_strided_slice %32 {offsets = [0, 128], sizes = [16, 128], strides = [1, 1]} : vector<16x256xf32> to vector<16x128xf32>
    %40 = arith.truncf %39 : vector<16x128xf32> to vector<16x128xbf16>
    %c0_25 = arith.constant 0 : index
    %c0_26 = arith.constant 0 : index
    %41 = vector.load %arg3[%c0_25, %c0_26] : memref<16x24xbf16, #tpu.memory_space<vmem>>, vector<16x24xbf16>
    %cst_27 = arith.constant dense<0.000000e+00> : vector<16x128xf32>
    %42 = tpu.matmul %41, %34, %cst_27 {dimension_numbers = #tpu.dot_dimension_numbers<[1], [0], [0], [1], [0, 0, 1, 1], [], []>} : vector<16x24xbf16>, vector<24x128xbf16>, vector<16x128xf32> -> vector<16x128xf32>
    %c0_28 = arith.constant 0 : index
    %c0_29 = arith.constant 0 : index
    %43 = vector.load %arg4[%c0_28, %c0_29] : memref<16x24xbf16, #tpu.memory_space<vmem>>, vector<16x24xbf16>
    %cst_30 = arith.constant dense<0.000000e+00> : vector<16x128xf32>
    %44 = tpu.matmul %43, %36, %cst_30 {dimension_numbers = #tpu.dot_dimension_numbers<[1], [0], [0], [1], [0, 0, 1, 1], [], []>} : vector<16x24xbf16>, vector<24x128xbf16>, vector<16x128xf32> -> vector<16x128xf32>
    %c0_31 = arith.constant 0 : index
    %c0_32 = arith.constant 0 : index
    %45 = vector.load %arg5[%c0_31, %c0_32] : memref<24x16xbf16, #tpu.memory_space<vmem>>, vector<24x16xbf16>
    %cst_33 = arith.constant dense<0.000000e+00> : vector<24x128xf32>
    %46 = tpu.matmul %45, %38, %cst_33 {dimension_numbers = #tpu.dot_dimension_numbers<[1], [0], [0], [1], [0, 0, 1, 1], [], []>} : vector<24x16xbf16>, vector<16x128xbf16>, vector<24x128xf32> -> vector<24x128xf32>
    %c0_34 = arith.constant 0 : index
    %c0_35 = arith.constant 0 : index
    %47 = vector.load %arg6[%c0_34, %c0_35] : memref<24x16xbf16, #tpu.memory_space<vmem>>, vector<24x16xbf16>
    %cst_36 = arith.constant dense<0.000000e+00> : vector<24x128xf32>
    %48 = tpu.matmul %47, %40, %cst_36 {dimension_numbers = #tpu.dot_dimension_numbers<[1], [0], [0], [1], [0, 0, 1, 1], [], []>} : vector<24x16xbf16>, vector<16x128xbf16>, vector<24x128xf32> -> vector<24x128xf32>
    %49 = arith.truncf %4 : vector<16x128xf32> to vector<16x128xbf16>
    %c0_37 = arith.constant 0 : index
    %c0_38 = arith.constant 0 : index
    %50 = vector.load %arg24[%c0_37, %c0_38] : memref<16x384xbf16, #tpu.memory_space<vmem>>, vector<16x128xbf16>
    tpu.vector_store %arg24[%c0_37, %c0_38], %49 {strides = array<i32>} : memref<16x384xbf16, #tpu.memory_space<vmem>>, vector<16x128xbf16>,
    %51 = arith.truncf %42 : vector<16x128xf32> to vector<16x128xbf16>
    %c0_39 = arith.constant 0 : index
    %c128 = arith.constant 128 : index
    %52 = vector.load %arg24[%c0_39, %c128] : memref<16x384xbf16, #tpu.memory_space<vmem>>, vector<16x128xbf16>
    tpu.vector_store %arg24[%c0_39, %c128], %51 {strides = array<i32>} : memref<16x384xbf16, #tpu.memory_space<vmem>>, vector<16x128xbf16>,
    %53 = arith.truncf %44 : vector<16x128xf32> to vector<16x128xbf16>
    %c0_40 = arith.constant 0 : index
    %c256 = arith.constant 256 : index
    %54 = vector.load %arg24[%c0_40, %c256] : memref<16x384xbf16, #tpu.memory_space<vmem>>, vector<16x128xbf16>
    tpu.vector_store %arg24[%c0_40, %c256], %53 {strides = array<i32>} : memref<16x384xbf16, #tpu.memory_space<vmem>>, vector<16x128xbf16>,
    %c0_41 = arith.constant 0 : index
    %c0_42 = arith.constant 0 : index
    %55 = vector.load %arg24[%c0_41, %c0_42] : memref<16x384xbf16, #tpu.memory_space<vmem>>, vector<16x384xbf16>
    %c0_43 = arith.constant 0 : index
    %c0_44 = arith.constant 0 : index
    %56 = vector.load %arg15[%c0_43, %c0_44] : memref<384x128xbf16, #tpu.memory_space<vmem>>, vector<384x128xbf16>
    %cst_45 = arith.constant dense<0.000000e+00> : vector<16x128xf32>
    %57 = tpu.matmul %55, %56, %cst_45 {dimension_numbers = #tpu.dot_dimension_numbers<[1], [0], [0], [1], [0, 0, 1, 1], [], []>} : vector<16x384xbf16>, vector<384x128xbf16>, vector<16x128xf32> -> vector<16x128xf32>
    %c0_46 = arith.constant 0 : index
    %c0_47 = arith.constant 0 : index
    %58 = vector.load %arg16[%c0_46, %c0_47] : memref<1x128xf32, #tpu.memory_space<vmem>>, vector<1x128xf32>
    %59 = vector.broadcast %58 : vector<1x128xf32> to vector<16x128xf32>
    %60 = arith.addf %57, %59 : vector<16x128xf32>
    %61 = arith.truncf %3 : vector<24x128xf32> to vector<24x128xbf16>
    %c0_48 = arith.constant 0 : index
    %c0_49 = arith.constant 0 : index
    %62 = vector.load %arg23[%c0_48, %c0_49] : memref<24x384xbf16, #tpu.memory_space<vmem>>, vector<24x128xbf16>
    tpu.vector_store %arg23[%c0_48, %c0_49], %61 {strides = array<i32>} : memref<24x384xbf16, #tpu.memory_space<vmem>>, vector<24x128xbf16>,
    %63 = arith.truncf %46 : vector<24x128xf32> to vector<24x128xbf16>
    %c0_50 = arith.constant 0 : index
    %c128_51 = arith.constant 128 : index
    %64 = vector.load %arg23[%c0_50, %c128_51] : memref<24x384xbf16, #tpu.memory_space<vmem>>, vector<24x128xbf16>
    tpu.vector_store %arg23[%c0_50, %c128_51], %63 {strides = array<i32>} : memref<24x384xbf16, #tpu.memory_space<vmem>>, vector<24x128xbf16>,
    %65 = arith.truncf %48 : vector<24x128xf32> to vector<24x128xbf16>
    %c0_52 = arith.constant 0 : index
    %c256_53 = arith.constant 256 : index
    %66 = vector.load %arg23[%c0_52, %c256_53] : memref<24x384xbf16, #tpu.memory_space<vmem>>, vector<24x128xbf16>
    tpu.vector_store %arg23[%c0_52, %c256_53], %65 {strides = array<i32>} : memref<24x384xbf16, #tpu.memory_space<vmem>>, vector<24x128xbf16>,
    %c0_54 = arith.constant 0 : index
    %c0_55 = arith.constant 0 : index
    %67 = vector.load %arg23[%c0_54, %c0_55] : memref<24x384xbf16, #tpu.memory_space<vmem>>, vector<24x384xbf16>
    %c0_56 = arith.constant 0 : index
    %c0_57 = arith.constant 0 : index
    %68 = vector.load %arg17[%c0_56, %c0_57] : memref<384x128xbf16, #tpu.memory_space<vmem>>, vector<384x128xbf16>
    %cst_58 = arith.constant dense<0.000000e+00> : vector<24x128xf32>
    %69 = tpu.matmul %67, %68, %cst_58 {dimension_numbers = #tpu.dot_dimension_numbers<[1], [0], [0], [1], [0, 0, 1, 1], [], []>} : vector<24x384xbf16>, vector<384x128xbf16>, vector<24x128xf32> -> vector<24x128xf32>
    %c0_59 = arith.constant 0 : index
    %c0_60 = arith.constant 0 : index
    %70 = vector.load %arg18[%c0_59, %c0_60] : memref<1x128xf32, #tpu.memory_space<vmem>>, vector<1x128xf32>
    %71 = vector.broadcast %70 : vector<1x128xf32> to vector<24x128xf32>
    %72 = arith.addf %69, %71 : vector<24x128xf32>
    %c0_61 = arith.constant 0 : index
    %c0_62 = arith.constant 0 : index
    %73 = vector.load %arg22[%c0_61, %c0_62] : memref<16x128xf32, #tpu.memory_space<vmem>>, vector<16x128xf32>
    tpu.vector_store %arg22[%c0_61, %c0_62], %60 {strides = array<i32>} : memref<16x128xf32, #tpu.memory_space<vmem>>, vector<16x128xf32>,
    %c0_63 = arith.constant 0 : index
    %c0_64 = arith.constant 0 : index
    %74 = vector.load %arg21[%c0_63, %c0_64] : memref<24x128xf32, #tpu.memory_space<vmem>>, vector<24x128xf32>
    tpu.vector_store %arg21[%c0_63, %c0_64], %72 {strides = array<i32>} : memref<24x128xf32, #tpu.memory_space<vmem>>, vector<24x128xf32>,
    %c0_65 = arith.constant 0 : index
    %c0_66 = arith.constant 0 : index
    %c0_67 = arith.constant 0 : index
    %75 = vector.load %arg20[%c0_65, %c0_66, %c0_67] : memref<1x16x128xf32, #tpu.memory_space<vmem>>, vector<1x16x128xf32>
    %76 = vector.shape_cast %75 : vector<1x16x128xf32> to vector<16x128xf32>
    %77 = vector.shape_cast %60 : vector<16x128xf32> to vector<1x16x128xf32>
    tpu.vector_store %arg20[%c0_65, %c0_66, %c0_67], %77 {strides = array<i32>} : memref<1x16x128xf32, #tpu.memory_space<vmem>>, vector<1x16x128xf32>,
    %c0_68 = arith.constant 0 : index
    %c0_69 = arith.constant 0 : index
    %c0_70 = arith.constant 0 : index
    %78 = vector.load %arg19[%c0_68, %c0_69, %c0_70] : memref<1x24x128xf32, #tpu.memory_space<vmem>>, vector<1x24x128xf32>
    %79 = vector.shape_cast %78 : vector<1x24x128xf32> to vector<24x128xf32>
    %80 = vector.shape_cast %72 : vector<24x128xf32> to vector<1x24x128xf32>
    tpu.vector_store %arg19[%c0_68, %c0_69, %c0_70], %80 {strides = array<i32>} : memref<1x24x128xf32, #tpu.memory_space<vmem>>, vector<1x24x128xf32>,
    return
  }
  func.func @transform_0(%arg0: i32) -> (i32, i32) {
    %c0_i32 = arith.constant 0 : i32
    %c0_i32_0 = arith.constant 0 : i32
    %c0_i32_1 = arith.constant 0 : i32
    return %c0_i32, %c0_i32_0 : i32, i32
  }
  func.func @transform_1(%arg0: i32) -> (i32, i32) {
    %c0_i32 = arith.constant 0 : i32
    %c0_i32_0 = arith.constant 0 : i32
    %c0_i32_1 = arith.constant 0 : i32
    return %c0_i32, %c0_i32_0 : i32, i32
  }
  func.func @transform_2(%arg0: i32) -> (i32, i32) {
    %c0_i32 = arith.constant 0 : i32
    %c0_i32_0 = arith.constant 0 : i32
    %c0_i32_1 = arith.constant 0 : i32
    return %c0_i32, %c0_i32_0 : i32, i32
  }
  func.func @transform_3(%arg0: i32) -> (i32, i32) {
    %c0_i32 = arith.constant 0 : i32
    %c0_i32_0 = arith.constant 0 : i32
    %c0_i32_1 = arith.constant 0 : i32
    return %c0_i32, %c0_i32_0 : i32, i32
  }
  func.func @transform_4(%arg0: i32) -> (i32, i32) {
    %c0_i32 = arith.constant 0 : i32
    %c0_i32_0 = arith.constant 0 : i32
    %c0_i32_1 = arith.constant 0 : i32
    return %c0_i32, %c0_i32_0 : i32, i32
  }
  func.func @transform_5(%arg0: i32) -> (i32, i32) {
    %c0_i32 = arith.constant 0 : i32
    %c0_i32_0 = arith.constant 0 : i32
    %c0_i32_1 = arith.constant 0 : i32
    return %c0_i32, %c0_i32_0 : i32, i32
  }
  func.func @transform_6(%arg0: i32) -> (i32, i32) {
    %c0_i32 = arith.constant 0 : i32
    %c0_i32_0 = arith.constant 0 : i32
    %c0_i32_1 = arith.constant 0 : i32
    return %c0_i32, %c0_i32_0 : i32, i32
  }
  func.func @transform_7(%arg0: i32) -> (i32, i32) {
    %c0_i32 = arith.constant 0 : i32
    %c0_i32_0 = arith.constant 0 : i32
    %c0_i32_1 = arith.constant 0 : i32
    return %c0_i32, %c0_i32_0 : i32, i32
  }
  func.func @transform_8(%arg0: i32) -> (i32, i32) {
    %c0_i32 = arith.constant 0 : i32
    %c0_i32_0 = arith.constant 0 : i32
    %c0_i32_1 = arith.constant 0 : i32
    return %c0_i32, %c0_i32_0 : i32, i32
  }
  func.func @transform_9(%arg0: i32) -> (i32, i32) {
    %c0_i32 = arith.constant 0 : i32
    %c0_i32_0 = arith.constant 0 : i32
    %c0_i32_1 = arith.constant 0 : i32
    return %c0_i32, %c0_i32_0 : i32, i32
  }
  func.func @transform_10(%arg0: i32) -> (i32, i32) {
    %c0_i32 = arith.constant 0 : i32
    %c0_i32_0 = arith.constant 0 : i32
    %c0_i32_1 = arith.constant 0 : i32
    return %c0_i32, %c0_i32_0 : i32, i32
  }
  func.func @transform_11(%arg0: i32) -> (i32, i32) {
    %c0_i32 = arith.constant 0 : i32
    %c0_i32_0 = arith.constant 0 : i32
    %c0_i32_1 = arith.constant 0 : i32
    return %c0_i32, %c0_i32_0 : i32, i32
  }
  func.func @transform_12(%arg0: i32) -> (i32, i32) {
    %c0_i32 = arith.constant 0 : i32
    %c0_i32_0 = arith.constant 0 : i32
    %c0_i32_1 = arith.constant 0 : i32
    return %c0_i32, %c0_i32_0 : i32, i32
  }
  func.func @transform_13(%arg0: i32) -> (i32, i32) {
    %c0_i32 = arith.constant 0 : i32
    %c0_i32_0 = arith.constant 0 : i32
    %c0_i32_1 = arith.constant 0 : i32
    return %c0_i32, %c0_i32_0 : i32, i32
  }
  func.func @transform_14(%arg0: i32) -> (i32, i32) {
    %c0_i32 = arith.constant 0 : i32
    %c0_i32_0 = arith.constant 0 : i32
    %c0_i32_1 = arith.constant 0 : i32
    return %c0_i32, %c0_i32_0 : i32, i32
  }
  func.func @transform_15(%arg0: i32) -> (i32, i32) {
    %c0_i32 = arith.constant 0 : i32
    %c0_i32_0 = arith.constant 0 : i32
    %c0_i32_1 = arith.constant 0 : i32
    return %c0_i32, %c0_i32_0 : i32, i32
  }
  func.func @transform_16(%arg0: i32) -> (i32, i32) {
    %c0_i32 = arith.constant 0 : i32
    %c0_i32_0 = arith.constant 0 : i32
    %c0_i32_1 = arith.constant 0 : i32
    return %c0_i32, %c0_i32_0 : i32, i32
  }
  func.func @transform_17(%arg0: i32) -> (i32, i32) {
    %c0_i32 = arith.constant 0 : i32
    %c0_i32_0 = arith.constant 0 : i32
    %c0_i32_1 = arith.constant 0 : i32
    return %c0_i32, %c0_i32_0 : i32, i32
  }
  func.func @transform_18(%arg0: i32) -> (i32, i32, i32) {
    %c0_i32 = arith.constant 0 : i32
    %c0_i32_0 = arith.constant 0 : i32
    %c0_i32_1 = arith.constant 0 : i32
    return %arg0, %c0_i32, %c0_i32_0 : i32, i32, i32
  }
  func.func @transform_19(%arg0: i32) -> (i32, i32, i32) {
    %c0_i32 = arith.constant 0 : i32
    %c0_i32_0 = arith.constant 0 : i32
    %c0_i32_1 = arith.constant 0 : i32
    return %arg0, %c0_i32, %c0_i32_0 : i32, i32, i32
  }
}

</mosaic_0001>

<llo_original>
// kernel: _gcn_vcg_jit.1
$region0: #{_gcn_vcg_jit.1}
  #allocation0 [shape = 'u32[]', space=smem, size = 0x4, offset = 0x4, fixed_abs, tag = 'smem constant byte address 0x4 - core index']
  #allocation1 [shape = 'u32[72,128]{1,0:T(1,128)}', space=vmem, size = 0x9000, scoped, tag = 'internal scratch']
  #allocation2 [shape = 'f32[24,128]{1,0:T(8,128)}', space=vmem, size = 0x3000, scoped, tag = 'scratch operand']
  #allocation3 [shape = 'f32[16,128]{1,0:T(8,128)}', space=vmem, size = 0x2000, scoped, tag = 'scratch operand']
  #allocation4 [shape = 'bf16[24,384]{1,0:T(8,128)(2,1)}', space=vmem, size = 0x4800, scoped, tag = 'scratch operand']
  #allocation5 [shape = 'bf16[16,384]{1,0:T(8,128)(2,1)}', space=vmem, size = 0x3000, scoped, tag = 'scratch operand']
  %s0 = inlined_call_operand.vmem [shape: f32[24,128], index: 0, kind: input, shape index: {}]
  %s1 = inlined_call_operand.vmem [shape: f32[16,128], index: 1, kind: input, shape index: {}]
  %s2 = inlined_call_operand.vmem [shape: bf16[16,24], index: 2, kind: input, shape index: {}]
  %s3 = inlined_call_operand.vmem [shape: bf16[16,24], index: 3, kind: input, shape index: {}]
  %s4 = inlined_call_operand.vmem [shape: bf16[24,16], index: 4, kind: input, shape index: {}]
  %s5 = inlined_call_operand.vmem [shape: bf16[24,16], index: 5, kind: input, shape index: {}]
  %s6 = inlined_call_operand.vmem [shape: bf16[128,256], index: 6, kind: input, shape index: {}]
  %s7 = inlined_call_operand.vmem [shape: f32[1,256], index: 7, kind: input, shape index: {}]
  %s8 = inlined_call_operand.vmem [shape: bf16[256,256], index: 8, kind: input, shape index: {}]
  %s9 = inlined_call_operand.vmem [shape: f32[1,256], index: 9, kind: input, shape index: {}]
  %s10 = inlined_call_operand.vmem [shape: bf16[128,256], index: 10, kind: input, shape index: {}]
  %s11 = inlined_call_operand.vmem [shape: f32[1,256], index: 11, kind: input, shape index: {}]
  %s12 = inlined_call_operand.vmem [shape: bf16[256,256], index: 12, kind: input, shape index: {}]
  %s13 = inlined_call_operand.vmem [shape: f32[1,256], index: 13, kind: input, shape index: {}]
  %s14 = inlined_call_operand.vmem [shape: bf16[384,128], index: 14, kind: input, shape index: {}]
  %s15 = inlined_call_operand.vmem [shape: f32[1,128], index: 15, kind: input, shape index: {}]
  %s16 = inlined_call_operand.vmem [shape: bf16[384,128], index: 16, kind: input, shape index: {}]
  %s17 = inlined_call_operand.vmem [shape: f32[1,128], index: 17, kind: input, shape index: {}]
  %s18 = inlined_call_operand.hbm [shape: f32[3,24,128], index: 18, kind: output, shape index: {0}]
  %s19 = inlined_call_operand.hbm [shape: f32[3,16,128], index: 19, kind: output, shape index: {1}]
  %20 = xla_tuple %s18, %s19
  %s21 = sld [smem:[#allocation0]]
  $region117: #{_gcn_vcg_jit.1} parent=0
    _
  %s23 = ssub.s32 1, %s21
  %s24 = scalar_select 0, %s23, %s21
  $region1: #{_gcn_vcg_jit.1} parent=0
    #allocation6 [shape = 'u8[24576]{0}', space=vmem, size = 0x6000, scoped, tag = 'output window, operand 0']
    #allocation7 [shape = 's32[2]{0}', space=sflag, size = 0x8, scoped, tag = 'scoped memory for _gcn_vcg_jit.1']
    #allocation8 [shape = 'u8[16384]{0}', space=vmem, size = 0x4000, scoped, tag = 'output window, operand 1']
    #allocation9 [shape = 's32[2]{0}', space=sflag, size = 0x8, scoped, tag = 'scoped memory for _gcn_vcg_jit.1']
    %25 = vsyncpa [#allocation7], 0
    %s26 = scalar_lea.sflag [#allocation7], 1
    %27 = vsyncpa %s26, 0
    %28 = vsyncpa [#allocation9], 0
    %s29 = scalar_lea.sflag [#allocation9], 1
    %30 = vsyncpa %s29, 0
    loop: start=0, step=1, limit=5
    $region2: #{_gcn_vcg_jit.1} parent=1 // loop_pre_header
      _
    $region3: #{_gcn_vcg_jit.1} parent=1 // loop_header
      %s32 = sphi 0, %s36
      %p33 = scmp.ge.s32.totalorder %s32, 5
      %s40 = sphi 0, %s40
      %s42 = sphi 0, %s40
      %s43 = sphi 0, %s42
      %s57 = sphi 0, %s43
      %s61 = sphi 0, %s61
      %s63 = sphi 0, %s61
      %s64 = sphi 0, %s63
      %s78 = sphi 0, %s64
      %s82 = sphi 0, %s82
      %s84 = sphi 0, %s82
      %s85 = sphi 0, %s84
      %s99 = sphi 0, %s85
      %s103 = sphi 0, %s103
      %s105 = sphi 0, %s103
      %s106 = sphi 0, %s105
      %s120 = sphi 0, %s106
      %s124 = sphi 0, %s124
      %s126 = sphi 0, %s124
      %s127 = sphi 0, %s126
      %s141 = sphi 0, %s127
      %s145 = sphi 0, %s145
      %s147 = sphi 0, %s145
      %s148 = sphi 0, %s147
      %s162 = sphi 0, %s148
      %s166 = sphi 0, %s166
      %s168 = sphi 0, %s166
      %s169 = sphi 0, %s168
      %s183 = sphi 0, %s169
      %s187 = sphi 0, %s187
      %s189 = sphi 0, %s187
      %s190 = sphi 0, %s189
      %s204 = sphi 0, %s190
      %s208 = sphi 0, %s208
      %s210 = sphi 0, %s208
      %s211 = sphi 0, %s210
      %s225 = sphi 0, %s211
      %s229 = sphi 0, %s229
      %s231 = sphi 0, %s229
      %s232 = sphi 0, %s231
      %s246 = sphi 0, %s232
      %s250 = sphi 0, %s250
      %s252 = sphi 0, %s250
      %s253 = sphi 0, %s252
      %s267 = sphi 0, %s253
      %s271 = sphi 0, %s271
      %s273 = sphi 0, %s271
      %s274 = sphi 0, %s273
      %s288 = sphi 0, %s274
      %s292 = sphi 0, %s292
      %s294 = sphi 0, %s292
      %s295 = sphi 0, %s294
      %s309 = sphi 0, %s295
      %s313 = sphi 0, %s313
      %s315 = sphi 0, %s313
      %s316 = sphi 0, %s315
      %s330 = sphi 0, %s316
      %s334 = sphi 0, %s334
      %s336 = sphi 0, %s334
      %s337 = sphi 0, %s336
      %s351 = sphi 0, %s337
      %s355 = sphi 0, %s355
      %s357 = sphi 0, %s355
      %s358 = sphi 0, %s357
      %s372 = sphi 0, %s358
      %s376 = sphi 0, %s376
      %s378 = sphi 0, %s376
      %s379 = sphi 0, %s378
      %s393 = sphi 0, %s379
      %s397 = sphi 0, %s397
      %s399 = sphi 0, %s397
      %s400 = sphi 0, %s399
      %s414 = sphi 0, %s400
      %s420 = sphi 0, %s422
      %s423 = sphi 0, %s420
      %s424 = sphi 0, %s423
      %s440 = sphi 0, %s424
      %s446 = sphi 0, %s448
      %s449 = sphi 0, %s446
      %s450 = sphi 0, %s449
      %s466 = sphi 0, %s450
    $region4: #{_gcn_vcg_jit.1} parent=1 // loop_header_branch
      %35 = sbr.rel (%p33) target = $region8
    $region5: #{_gcn_vcg_jit.1} parent=1 // loop_body
      %s37 = ssub.s32 %s32, 1
      %s38 = ssub.s32 %s32, 2
      %s39 = sadd.s32 %s32, 1
      %s41 = sadd.s32 %s40, 1
      %p44 = scmp.eq.s32.totalorder %s32, 2
      %p45 = scmp.ne.s32.totalorder %s40, %s42
      %p46 = scmp.eq.s32.totalorder %s32, 0
      %p47 = por %p45, %p46
      %p48 = scmp.ne.s32.totalorder %s40, %s42
      %p49 = scmp.eq.s32.totalorder %s37, 2
      %p50 = por %p48, %p49
      %p51 = scmp.ne.s32.totalorder %s42, %s43
      %p52 = scmp.eq.s32.totalorder %s37, 0
      %p53 = por %p51, %p52
      %p54 = scmp.ne.s32.totalorder %s42, %s43
      %p55 = scmp.eq.s32.totalorder %s38, 2
      %p56 = por %p54, %p55
      %p58 = scmp.ne.s32.totalorder %s43, %s57
      %p59 = scmp.eq.s32.totalorder %s38, 0
      %p60 = por %p58, %p59
      %s62 = sadd.s32 %s61, 1
      %p65 = scmp.eq.s32.totalorder %s32, 2
      %p66 = scmp.ne.s32.totalorder %s61, %s63
      %p67 = scmp.eq.s32.totalorder %s32, 0
      %p68 = por %p66, %p67
      %p69 = scmp.ne.s32.totalorder %s61, %s63
      %p70 = scmp.eq.s32.totalorder %s37, 2
      %p71 = por %p69, %p70
      %p72 = scmp.ne.s32.totalorder %s63, %s64
      %p73 = scmp.eq.s32.totalorder %s37, 0
      %p74 = por %p72, %p73
      %p75 = scmp.ne.s32.totalorder %s63, %s64
      %p76 = scmp.eq.s32.totalorder %s38, 2
      %p77 = por %p75, %p76
      %p79 = scmp.ne.s32.totalorder %s64, %s78
      %p80 = scmp.eq.s32.totalorder %s38, 0
      %p81 = por %p79, %p80
      %s83 = sadd.s32 %s82, 1
      %p86 = scmp.eq.s32.totalorder %s32, 2
      %p87 = scmp.ne.s32.totalorder %s82, %s84
      %p88 = scmp.eq.s32.totalorder %s32, 0
      %p89 = por %p87, %p88
      %p90 = scmp.ne.s32.totalorder %s82, %s84
      %p91 = scmp.eq.s32.totalorder %s37, 2
      %p92 = por %p90, %p91
      %p93 = scmp.ne.s32.totalorder %s84, %s85
      %p94 = scmp.eq.s32.totalorder %s37, 0
      %p95 = por %p93, %p94
      %p96 = scmp.ne.s32.totalorder %s84, %s85
      %p97 = scmp.eq.s32.totalorder %s38, 2
      %p98 = por %p96, %p97
      %p100 = scmp.ne.s32.totalorder %s85, %s99
      %p101 = scmp.eq.s32.totalorder %s38, 0
      %p102 = por %p100, %p101
      %s104 = sadd.s32 %s103, 1
      %p107 = scmp.eq.s32.totalorder %s32, 2
      %p108 = scmp.ne.s32.totalorder %s103, %s105
      %p109 = scmp.eq.s32.totalorder %s32, 0
      %p110 = por %p108, %p109
      %p111 = scmp.ne.s32.totalorder %s103, %s105
      %p112 = scmp.eq.s32.totalorder %s37, 2
      %p113 = por %p111, %p112
      %p114 = scmp.ne.s32.totalorder %s105, %s106
      %p115 = scmp.eq.s32.totalorder %s37, 0
      %p116 = por %p114, %p115
      %p117 = scmp.ne.s32.totalorder %s105, %s106
      %p118 = scmp.eq.s32.totalorder %s38, 2
      %p119 = por %p117, %p118
      %p121 = scmp.ne.s32.totalorder %s106, %s120
      %p122 = scmp.eq.s32.totalorder %s38, 0
      %p123 = por %p121, %p122
      %s125 = sadd.s32 %s124, 1
      %p128 = scmp.eq.s32.totalorder %s32, 2
      %p129 = scmp.ne.s32.totalorder %s124, %s126
      %p130 = scmp.eq.s32.totalorder %s32, 0
      %p131 = por %p129, %p130
      %p132 = scmp.ne.s32.totalorder %s124, %s126
      %p133 = scmp.eq.s32.totalorder %s37, 2
      %p134 = por %p132, %p133
      %p135 = scmp.ne.s32.totalorder %s126, %s127
      %p136 = scmp.eq.s32.totalorder %s37, 0
      %p137 = por %p135, %p136
      %p138 = scmp.ne.s32.totalorder %s126, %s127
      %p139 = scmp.eq.s32.totalorder %s38, 2
      %p140 = por %p138, %p139
      %p142 = scmp.ne.s32.totalorder %s127, %s141
      %p143 = scmp.eq.s32.totalorder %s38, 0
      %p144 = por %p142, %p143
      %s146 = sadd.s32 %s145, 1
      %p149 = scmp.eq.s32.totalorder %s32, 2
      %p150 = scmp.ne.s32.totalorder %s145, %s147
      %p151 = scmp.eq.s32.totalorder %s32, 0
      %p152 = por %p150, %p151
      %p153 = scmp.ne.s32.totalorder %s145, %s147
      %p154 = scmp.eq.s32.totalorder %s37, 2
      %p155 = por %p153, %p154
      %p156 = scmp.ne.s32.totalorder %s147, %s148
      %p157 = scmp.eq.s32.totalorder %s37, 0
      %p158 = por %p156, %p157
      %p159 = scmp.ne.s32.totalorder %s147, %s148
      %p160 = scmp.eq.s32.totalorder %s38, 2
      %p161 = por %p159, %p160
      %p163 = scmp.ne.s32.totalorder %s148, %s162
      %p164 = scmp.eq.s32.totalorder %s38, 0
      %p165 = por %p163, %p164
      %s167 = sadd.s32 %s166, 1
      %p170 = scmp.eq.s32.totalorder %s32, 2
      %p171 = scmp.ne.s32.totalorder %s166, %s168
      %p172 = scmp.eq.s32.totalorder %s32, 0
      %p173 = por %p171, %p172
      %p174 = scmp.ne.s32.totalorder %s166, %s168
      %p175 = scmp.eq.s32.totalorder %s37, 2
      %p176 = por %p174, %p175
      %p177 = scmp.ne.s32.totalorder %s168, %s169
      %p178 = scmp.eq.s32.totalorder %s37, 0
      %p179 = por %p177, %p178
      %p180 = scmp.ne.s32.totalorder %s168, %s169
      %p181 = scmp.eq.s32.totalorder %s38, 2
      %p182 = por %p180, %p181
      %p184 = scmp.ne.s32.totalorder %s169, %s183
      %p185 = scmp.eq.s32.totalorder %s38, 0
      %p186 = por %p184, %p185
      %s188 = sadd.s32 %s187, 1
      %p191 = scmp.eq.s32.totalorder %s32, 2
      %p192 = scmp.ne.s32.totalorder %s187, %s189
      %p193 = scmp.eq.s32.totalorder %s32, 0
      %p194 = por %p192, %p193
      %p195 = scmp.ne.s32.totalorder %s187, %s189
      %p196 = scmp.eq.s32.totalorder %s37, 2
      %p197 = por %p195, %p196
      %p198 = scmp.ne.s32.totalorder %s189, %s190
      %p199 = scmp.eq.s32.totalorder %s37, 0
      %p200 = por %p198, %p199
      %p201 = scmp.ne.s32.totalorder %s189, %s190
      %p202 = scmp.eq.s32.totalorder %s38, 2
      %p203 = por %p201, %p202
      %p205 = scmp.ne.s32.totalorder %s190, %s204
      %p206 = scmp.eq.s32.totalorder %s38, 0
      %p207 = por %p205, %p206
      %s209 = sadd.s32 %s208, 1
      %p212 = scmp.eq.s32.totalorder %s32, 2
      %p213 = scmp.ne.s32.totalorder %s208, %s210
      %p214 = scmp.eq.s32.totalorder %s32, 0
      %p215 = por %p213, %p214
      %p216 = scmp.ne.s32.totalorder %s208, %s210
      %p217 = scmp.eq.s32.totalorder %s37, 2
      %p218 = por %p216, %p217
      %p219 = scmp.ne.s32.totalorder %s210, %s211
      %p220 = scmp.eq.s32.totalorder %s37, 0
      %p221 = por %p219, %p220
      %p222 = scmp.ne.s32.totalorder %s210, %s211
      %p223 = scmp.eq.s32.totalorder %s38, 2
      %p224 = por %p222, %p223
      %p226 = scmp.ne.s32.totalorder %s211, %s225
      %p227 = scmp.eq.s32.totalorder %s38, 0
      %p228 = por %p226, %p227
      %s230 = sadd.s32 %s229, 1
      %p233 = scmp.eq.s32.totalorder %s32, 2
      %p234 = scmp.ne.s32.totalorder %s229, %s231
      %p235 = scmp.eq.s32.totalorder %s32, 0
      %p236 = por %p234, %p235
      %p237 = scmp.ne.s32.totalorder %s229, %s231
      %p238 = scmp.eq.s32.totalorder %s37, 2
      %p239 = por %p237, %p238
      %p240 = scmp.ne.s32.totalorder %s231, %s232
      %p241 = scmp.eq.s32.totalorder %s37, 0
      %p242 = por %p240, %p241
      %p243 = scmp.ne.s32.totalorder %s231, %s232
      %p244 = scmp.eq.s32.totalorder %s38, 2
      %p245 = por %p243, %p244
      %p247 = scmp.ne.s32.totalorder %s232, %s246
      %p248 = scmp.eq.s32.totalorder %s38, 0
      %p249 = por %p247, %p248
      %s251 = sadd.s32 %s250, 1
      %p254 = scmp.eq.s32.totalorder %s32, 2
      %p255 = scmp.ne.s32.totalorder %s250, %s252
      %p256 = scmp.eq.s32.totalorder %s32, 0
      %p257 = por %p255, %p256
      %p258 = scmp.ne.s32.totalorder %s250, %s252
      %p259 = scmp.eq.s32.totalorder %s37, 2
      %p260 = por %p258, %p259
      %p261 = scmp.ne.s32.totalorder %s252, %s253
      %p262 = scmp.eq.s32.totalorder %s37, 0
      %p263 = por %p261, %p262
      %p264 = scmp.ne.s32.totalorder %s252, %s253
      %p265 = scmp.eq.s32.totalorder %s38, 2
      %p266 = por %p264, %p265
      %p268 = scmp.ne.s32.totalorder %s253, %s267
      %p269 = scmp.eq.s32.totalorder %s38, 0
      %p270 = por %p268, %p269
      %s272 = sadd.s32 %s271, 1
      %p275 = scmp.eq.s32.totalorder %s32, 2
      %p276 = scmp.ne.s32.totalorder %s271, %s273
      %p277 = scmp.eq.s32.totalorder %s32, 0
      %p278 = por %p276, %p277
      %p279 = scmp.ne.s32.totalorder %s271, %s273
      %p280 = scmp.eq.s32.totalorder %s37, 2
      %p281 = por %p279, %p280
      %p282 = scmp.ne.s32.totalorder %s273, %s274
      %p283 = scmp.eq.s32.totalorder %s37, 0
      %p284 = por %p282, %p283
      %p285 = scmp.ne.s32.totalorder %s273, %s274
      %p286 = scmp.eq.s32.totalorder %s38, 2
      %p287 = por %p285, %p286
      %p289 = scmp.ne.s32.totalorder %s274, %s288
      %p290 = scmp.eq.s32.totalorder %s38, 0
      %p291 = por %p289, %p290
      %s293 = sadd.s32 %s292, 1
      %p296 = scmp.eq.s32.totalorder %s32, 2
      %p297 = scmp.ne.s32.totalorder %s292, %s294
      %p298 = scmp.eq.s32.totalorder %s32, 0
      %p299 = por %p297, %p298
      %p300 = scmp.ne.s32.totalorder %s292, %s294
      %p301 = scmp.eq.s32.totalorder %s37, 2
      %p302 = por %p300, %p301
      %p303 = scmp.ne.s32.totalorder %s294, %s295
      %p304 = scmp.eq.s32.totalorder %s37, 0
      %p305 = por %p303, %p304
      %p306 = scmp.ne.s32.totalorder %s294, %s295
      %p307 = scmp.eq.s32.totalorder %s38, 2
      %p308 = por %p306, %p307
      %p310 = scmp.ne.s32.totalorder %s295, %s309
      %p311 = scmp.eq.s32.totalorder %s38, 0
      %p312 = por %p310, %p311
      %s314 = sadd.s32 %s313, 1
      %p317 = scmp.eq.s32.totalorder %s32, 2
      %p318 = scmp.ne.s32.totalorder %s313, %s315
      %p319 = scmp.eq.s32.totalorder %s32, 0
      %p320 = por %p318, %p319
      %p321 = scmp.ne.s32.totalorder %s313, %s315
      %p322 = scmp.eq.s32.totalorder %s37, 2
      %p323 = por %p321, %p322
      %p324 = scmp.ne.s32.totalorder %s315, %s316
      %p325 = scmp.eq.s32.totalorder %s37, 0
      %p326 = por %p324, %p325
      %p327 = scmp.ne.s32.totalorder %s315, %s316
      %p328 = scmp.eq.s32.totalorder %s38, 2
      %p329 = por %p327, %p328
      %p331 = scmp.ne.s32.totalorder %s316, %s330
      %p332 = scmp.eq.s32.totalorder %s38, 0
      %p333 = por %p331, %p332
      %s335 = sadd.s32 %s334, 1
      %p338 = scmp.eq.s32.totalorder %s32, 2
      %p339 = scmp.ne.s32.totalorder %s334, %s336
      %p340 = scmp.eq.s32.totalorder %s32, 0
      %p341 = por %p339, %p340
      %p342 = scmp.ne.s32.totalorder %s334, %s336
      %p343 = scmp.eq.s32.totalorder %s37, 2
      %p344 = por %p342, %p343
      %p345 = scmp.ne.s32.totalorder %s336, %s337
      %p346 = scmp.eq.s32.totalorder %s37, 0
      %p347 = por %p345, %p346
      %p348 = scmp.ne.s32.totalorder %s336, %s337
      %p349 = scmp.eq.s32.totalorder %s38, 2
      %p350 = por %p348, %p349
      %p352 = scmp.ne.s32.totalorder %s337, %s351
      %p353 = scmp.eq.s32.totalorder %s38, 0
      %p354 = por %p352, %p353
      %s356 = sadd.s32 %s355, 1
      %p359 = scmp.eq.s32.totalorder %s32, 2
      %p360 = scmp.ne.s32.totalorder %s355, %s357
      %p361 = scmp.eq.s32.totalorder %s32, 0
      %p362 = por %p360, %p361
      %p363 = scmp.ne.s32.totalorder %s355, %s357
      %p364 = scmp.eq.s32.totalorder %s37, 2
      %p365 = por %p363, %p364
      %p366 = scmp.ne.s32.totalorder %s357, %s358
      %p367 = scmp.eq.s32.totalorder %s37, 0
      %p368 = por %p366, %p367
      %p369 = scmp.ne.s32.totalorder %s357, %s358
      %p370 = scmp.eq.s32.totalorder %s38, 2
      %p371 = por %p369, %p370
      %p373 = scmp.ne.s32.totalorder %s358, %s372
      %p374 = scmp.eq.s32.totalorder %s38, 0
      %p375 = por %p373, %p374
      %s377 = sadd.s32 %s376, 1
      %p380 = scmp.eq.s32.totalorder %s32, 2
      %p381 = scmp.ne.s32.totalorder %s376, %s378
      %p382 = scmp.eq.s32.totalorder %s32, 0
      %p383 = por %p381, %p382
      %p384 = scmp.ne.s32.totalorder %s376, %s378
      %p385 = scmp.eq.s32.totalorder %s37, 2
      %p386 = por %p384, %p385
      %p387 = scmp.ne.s32.totalorder %s378, %s379
      %p388 = scmp.eq.s32.totalorder %s37, 0
      %p389 = por %p387, %p388
      %p390 = scmp.ne.s32.totalorder %s378, %s379
      %p391 = scmp.eq.s32.totalorder %s38, 2
      %p392 = por %p390, %p391
      %p394 = scmp.ne.s32.totalorder %s379, %s393
      %p395 = scmp.eq.s32.totalorder %s38, 0
      %p396 = por %p394, %p395
      %s398 = sadd.s32 %s397, 1
      %p401 = scmp.eq.s32.totalorder %s32, 2
      %p402 = scmp.ne.s32.totalorder %s397, %s399
      %p403 = scmp.eq.s32.totalorder %s32, 0
      %p404 = por %p402, %p403
      %p405 = scmp.ne.s32.totalorder %s397, %s399
      %p406 = scmp.eq.s32.totalorder %s37, 2
      %p407 = por %p405, %p406
      %p408 = scmp.ne.s32.totalorder %s399, %s400
      %p409 = scmp.eq.s32.totalorder %s37, 0
      %p410 = por %p408, %p409
      %p411 = scmp.ne.s32.totalorder %s399, %s400
      %p412 = scmp.eq.s32.totalorder %s38, 2
      %p413 = por %p411, %p412
      %p415 = scmp.ne.s32.totalorder %s400, %s414
      %p416 = scmp.eq.s32.totalorder %s38, 0
      %p417 = por %p415, %p416
      %s418 = ssub.s32 %s32, %s39
      %p419 = scmp.eq.s32.totalorder %s418, 0
      %s421 = sadd.s32 %s420, 1
      %s422 = scalar_select %p419, %s420, %s421
      %p425 = pneg %p419
      %p426 = scmp.eq.s32.totalorder %s32, 2
      %p427 = por %p425, %p426
      %p428 = scmp.ne.s32.totalorder %s420, %s423
      %p429 = scmp.eq.s32.totalorder %s32, 0
      %p430 = por %p428, %p429
      %p431 = scmp.ne.s32.totalorder %s420, %s423
      %p432 = scmp.eq.s32.totalorder %s37, 2
      %p433 = por %p431, %p432
      %p434 = scmp.ne.s32.totalorder %s423, %s424
      %p435 = scmp.eq.s32.totalorder %s37, 0
      %p436 = por %p434, %p435
      %p437 = scmp.ne.s32.totalorder %s423, %s424
      %p438 = scmp.eq.s32.totalorder %s38, 2
      %p439 = por %p437, %p438
      %p441 = scmp.ne.s32.totalorder %s424, %s440
      %p442 = scmp.eq.s32.totalorder %s38, 0
      %p443 = por %p441, %p442
      %s444 = ssub.s32 %s32, %s39
      %p445 = scmp.eq.s32.totalorder %s444, 0
      %s447 = sadd.s32 %s446, 1
      %s448 = scalar_select %p445, %s446, %s447
      %p451 = pneg %p445
      %p452 = scmp.eq.s32.totalorder %s32, 2
      %p453 = por %p451, %p452
      %p454 = scmp.ne.s32.totalorder %s446, %s449
      %p455 = scmp.eq.s32.totalorder %s32, 0
      %p456 = por %p454, %p455
      %p457 = scmp.ne.s32.totalorder %s446, %s449
      %p458 = scmp.eq.s32.totalorder %s37, 2
      %p459 = por %p457, %p458
      %p460 = scmp.ne.s32.totalorder %s449, %s450
      %p461 = scmp.eq.s32.totalorder %s37, 0
      %p462 = por %p460, %p461
      %p463 = scmp.ne.s32.totalorder %s449, %s450
      %p464 = scmp.eq.s32.totalorder %s38, 2
      %p465 = por %p463, %p464
      %p467 = scmp.ne.s32.totalorder %s450, %s466
      %p468 = scmp.eq.s32.totalorder %s38, 0
      %p469 = por %p467, %p468
      %p470 = scmp.le.s32.totalorder 1, %s32
      %p471 = scmp.lt.s32.totalorder %s32, 4
      %p472 = pnand %p470, %p471
      %p473 = pneg %p472
      // Predicated region
      $region9: #{_gcn_vcg_jit.1} parent=5 // pred_check
        _
      $region10: #{_gcn_vcg_jit.1} parent=5 // pred_check_branch
        %475 = sbr.rel (%p472) target = $region12
      $region11: #{_gcn_vcg_jit.1} parent=5 // pred_region
        %s476 = ssub.s32 %s32, 1
        // Predicated region
        $region13: #{_gcn_vcg_jit.1} parent=11 // pred_check
          %p477 = pneg %p53
        $region14: #{_gcn_vcg_jit.1} parent=11 // pred_check_branch
          %479 = sbr.rel (%p477) target = $region16
        $region15: #{_gcn_vcg_jit.1} parent=11 // pred_region
          _
        $region16: #{_gcn_vcg_jit.1} parent=11 // pred_fallthru
          _
        // Predicated region
        $region17: #{_gcn_vcg_jit.1} parent=11 // pred_check
          %p480 = pneg %p74
        $region18: #{_gcn_vcg_jit.1} parent=11 // pred_check_branch
          %482 = sbr.rel (%p480) target = $region20
        $region19: #{_gcn_vcg_jit.1} parent=11 // pred_region
          _
        $region20: #{_gcn_vcg_jit.1} parent=11 // pred_fallthru
          _
        // Predicated region
        $region21: #{_gcn_vcg_jit.1} parent=11 // pred_check
          %p483 = pneg %p95
        $region22: #{_gcn_vcg_jit.1} parent=11 // pred_check_branch
          %485 = sbr.rel (%p483) target = $region24
        $region23: #{_gcn_vcg_jit.1} parent=11 // pred_region
          _
        $region24: #{_gcn_vcg_jit.1} parent=11 // pred_fallthru
          _
        // Predicated region
        $region25: #{_gcn_vcg_jit.1} parent=11 // pred_check
          %p486 = pneg %p116
        $region26: #{_gcn_vcg_jit.1} parent=11 // pred_check_branch
          %488 = sbr.rel (%p486) target = $region28
        $region27: #{_gcn_vcg_jit.1} parent=11 // pred_region
          _
        $region28: #{_gcn_vcg_jit.1} parent=11 // pred_fallthru
          _
        // Predicated region
        $region29: #{_gcn_vcg_jit.1} parent=11 // pred_check
          %p489 = pneg %p137
        $region30: #{_gcn_vcg_jit.1} parent=11 // pred_check_branch
          %491 = sbr.rel (%p489) target = $region32
        $region31: #{_gcn_vcg_jit.1} parent=11 // pred_region
          _
        $region32: #{_gcn_vcg_jit.1} parent=11 // pred_fallthru
          _
        // Predicated region
        $region33: #{_gcn_vcg_jit.1} parent=11 // pred_check
          %p492 = pneg %p158
        $region34: #{_gcn_vcg_jit.1} parent=11 // pred_check_branch
          %494 = sbr.rel (%p492) target = $region36
        $region35: #{_gcn_vcg_jit.1} parent=11 // pred_region
          _
        $region36: #{_gcn_vcg_jit.1} parent=11 // pred_fallthru
          _
        // Predicated region
        $region37: #{_gcn_vcg_jit.1} parent=11 // pred_check
          %p495 = pneg %p179
        $region38: #{_gcn_vcg_jit.1} parent=11 // pred_check_branch
          %497 = sbr.rel (%p495) target = $region40
        $region39: #{_gcn_vcg_jit.1} parent=11 // pred_region
          _
        $region40: #{_gcn_vcg_jit.1} parent=11 // pred_fallthru
          _
        // Predicated region
        $region41: #{_gcn_vcg_jit.1} parent=11 // pred_check
          %p498 = pneg %p200
        $region42: #{_gcn_vcg_jit.1} parent=11 // pred_check_branch
          %500 = sbr.rel (%p498) target = $region44
        $region43: #{_gcn_vcg_jit.1} parent=11 // pred_region
          _
        $region44: #{_gcn_vcg_jit.1} parent=11 // pred_fallthru
          _
        // Predicated region
        $region45: #{_gcn_vcg_jit.1} parent=11 // pred_check
          %p501 = pneg %p221
        $region46: #{_gcn_vcg_jit.1} parent=11 // pred_check_branch
          %503 = sbr.rel (%p501) target = $region48
        $region47: #{_gcn_vcg_jit.1} parent=11 // pred_region
          _
        $region48: #{_gcn_vcg_jit.1} parent=11 // pred_fallthru
          _
        // Predicated region
        $region49: #{_gcn_vcg_jit.1} parent=11 // pred_check
          %p504 = pneg %p242
        $region50: #{_gcn_vcg_jit.1} parent=11 // pred_check_branch
          %506 = sbr.rel (%p504) target = $region52
        $region51: #{_gcn_vcg_jit.1} parent=11 // pred_region
          _
        $region52: #{_gcn_vcg_jit.1} parent=11 // pred_fallthru
          _
        // Predicated region
        $region53: #{_gcn_vcg_jit.1} parent=11 // pred_check
          %p507 = pneg %p263
        $region54: #{_gcn_vcg_jit.1} parent=11 // pred_check_branch
          %509 = sbr.rel (%p507) target = $region56
        $region55: #{_gcn_vcg_jit.1} parent=11 // pred_region
          _
        $region56: #{_gcn_vcg_jit.1} parent=11 // pred_fallthru
          _
        // Predicated region
        $region57: #{_gcn_vcg_jit.1} parent=11 // pred_check
          %p510 = pneg %p284
        $region58: #{_gcn_vcg_jit.1} parent=11 // pred_check_branch
          %512 = sbr.rel (%p510) target = $region60
        $region59: #{_gcn_vcg_jit.1} parent=11 // pred_region
          _
        $region60: #{_gcn_vcg_jit.1} parent=11 // pred_fallthru
          _
        // Predicated region
        $region61: #{_gcn_vcg_jit.1} parent=11 // pred_check
          %p513 = pneg %p305
        $region62: #{_gcn_vcg_jit.1} parent=11 // pred_check_branch
          %515 = sbr.rel (%p513) target = $region64
        $region63: #{_gcn_vcg_jit.1} parent=11 // pred_region
          _
        $region64: #{_gcn_vcg_jit.1} parent=11 // pred_fallthru
          _
        // Predicated region
        $region65: #{_gcn_vcg_jit.1} parent=11 // pred_check
          %p516 = pneg %p326
        $region66: #{_gcn_vcg_jit.1} parent=11 // pred_check_branch
          %518 = sbr.rel (%p516) target = $region68
        $region67: #{_gcn_vcg_jit.1} parent=11 // pred_region
          _
        $region68: #{_gcn_vcg_jit.1} parent=11 // pred_fallthru
          _
        // Predicated region
        $region69: #{_gcn_vcg_jit.1} parent=11 // pred_check
          %p519 = pneg %p347
        $region70: #{_gcn_vcg_jit.1} parent=11 // pred_check_branch
          %521 = sbr.rel (%p519) target = $region72
        $region71: #{_gcn_vcg_jit.1} parent=11 // pred_region
          _
        $region72: #{_gcn_vcg_jit.1} parent=11 // pred_fallthru
          _
        // Predicated region
        $region73: #{_gcn_vcg_jit.1} parent=11 // pred_check
          %p522 = pneg %p368
        $region74: #{_gcn_vcg_jit.1} parent=11 // pred_check_branch
          %524 = sbr.rel (%p522) target = $region76
        $region75: #{_gcn_vcg_jit.1} parent=11 // pred_region
          _
        $region76: #{_gcn_vcg_jit.1} parent=11 // pred_fallthru
          _
        // Predicated region
        $region77: #{_gcn_vcg_jit.1} parent=11 // pred_check
          %p525 = pneg %p389
        $region78: #{_gcn_vcg_jit.1} parent=11 // pred_check_branch
          %527 = sbr.rel (%p525) target = $region80
        $region79: #{_gcn_vcg_jit.1} parent=11 // pred_region
          _
        $region80: #{_gcn_vcg_jit.1} parent=11 // pred_fallthru
          _
        // Predicated region
        $region81: #{_gcn_vcg_jit.1} parent=11 // pred_check
          %p528 = pneg %p410
        $region82: #{_gcn_vcg_jit.1} parent=11 // pred_check_branch
          %530 = sbr.rel (%p528) target = $region84
        $region83: #{_gcn_vcg_jit.1} parent=11 // pred_region
          _
        $region84: #{_gcn_vcg_jit.1} parent=11 // pred_fallthru
          _
      $region12: #{_gcn_vcg_jit.1} parent=5 // pred_fallthru
        _
      %p531 = scmp.lt.s32.totalorder %s32, 3
      // Predicated region
      $region85: #{_gcn_vcg_jit.1} parent=5 // pred_check
        %p532 = pneg %p531
      $region86: #{_gcn_vcg_jit.1} parent=5 // pred_check_branch
        %534 = sbr.rel (%p532) target = $region88
      $region87: #{_gcn_vcg_jit.1} parent=5 // pred_region
        _
      $region88: #{_gcn_vcg_jit.1} parent=5 // pred_fallthru
        _
      %p535 = scmp.le.s32.totalorder 1, %s32
      %p536 = scmp.lt.s32.totalorder %s32, 4
      %p537 = pnand %p535, %p536
      %p538 = pneg %p537
      // Predicated region
      $region89: #{_gcn_vcg_jit.1} parent=5 // pred_check
        _
      $region90: #{_gcn_vcg_jit.1} parent=5 // pred_check_branch
        %540 = sbr.rel (%p537) target = $region92
      $region91: #{_gcn_vcg_jit.1} parent=5 // pred_region
        %s541 = ssub.s32 %s32, 1
        %p542 = pneg %p53
        %p543 = pneg %p50
        %p544 = pneg %p74
        %p545 = pneg %p71
        %p546 = pneg %p95
        %p547 = pneg %p92
        %p548 = pneg %p116
        %p549 = pneg %p113
        %p550 = pneg %p137
        %p551 = pneg %p134
        %p552 = pneg %p158
        %p553 = pneg %p155
        %p554 = pneg %p179
        %p555 = pneg %p176
        %p556 = pneg %p200
        %p557 = pneg %p197
        %p558 = pneg %p221
        %p559 = pneg %p218
        %p560 = pneg %p242
        %p561 = pneg %p239
        %p562 = pneg %p263
        %p563 = pneg %p260
        %p564 = pneg %p284
        %p565 = pneg %p281
        %p566 = pneg %p305
        %p567 = pneg %p302
        %p568 = pneg %p326
        %p569 = pneg %p323
        %p570 = pneg %p347
        %p571 = pneg %p344
        %p572 = pneg %p368
        %p573 = pneg %p365
        %p574 = pneg %p389
        %p575 = pneg %p386
        %p576 = pneg %p410
        %p577 = pneg %p407
        %p578 = pneg %p436
        %p579 = pneg %p433
        %s580 = sand.u32 %s423, 1
        %s581 = scalar_lea.sflag [#allocation7], %s580
        %s582 = sand.u32 %s423, 1
        %s583 = smul.addr %s582, 24
        %s584 = scalar_lea.vmem [#allocation6], %s583
        %p585 = pneg %p462
        %p586 = pneg %p459
        %s587 = sand.u32 %s449, 1
        %s588 = scalar_lea.sflag [#allocation9], %s587
        %s589 = sand.u32 %s449, 1
        %s590 = smul.addr %s589, 16
        %s591 = scalar_lea.vmem [#allocation8], %s590
        %p593 = scmp.eq.s32.totalorder %s37, 0
        // Predicated region
        $region93: #{_gcn_vcg_jit.1} parent=91 // pred_check
          %p594 = pneg %p593
        $region94: #{_gcn_vcg_jit.1} parent=91 // pred_check_branch
          %596 = sbr.rel (%p594) target = $region96
        $region95: #{_gcn_vcg_jit.1} parent=91 // pred_region
          %v597 = vld [vmem:[%s0] sm:$0xff]
          %v598 = vld [vmem:[%s0 + $0x8] sm:$0xff]
          %v599 = vld [vmem:[%s0 + $0x10] sm:$0xff]
          %600 = vst [vmem:[#allocation2] sm:$0xff] %v597
          %601 = vst [vmem:[#allocation2 + $0x8] sm:$0xff] %v598
          %602 = vst [vmem:[#allocation2 + $0x10] sm:$0xff] %v599
          %v603 = vld [vmem:[%s1] sm:$0xff]
          %v604 = vld [vmem:[%s1 + $0x8] sm:$0xff]
          %605 = vst [vmem:[#allocation3] sm:$0xff] %v603
          %606 = vst [vmem:[#allocation3 + $0x8] sm:$0xff] %v604
        $region96: #{_gcn_vcg_jit.1} parent=91 // pred_fallthru
          _
        %v607 = vld [vmem:[#allocation2] sm:$0xff]
        %v608 = vld [vmem:[#allocation2 + $0x8] sm:$0xff]
        %v609 = vld [vmem:[#allocation2 + $0x10] sm:$0xff]
        %v610 = vld [vmem:[#allocation3] sm:$0xff]
        %v611 = vld [vmem:[#allocation3 + $0x8] sm:$0xff]
        %v612 = vpack.c.bf16 %v607, %v607
        %v613 = vpack.c.bf16 %v608, %v608
        %v614 = vpack.c.bf16 %v609, %v609
        %v615 = vld [vmem:[%s6] sm:$0xff]
        %v616 = vld [vmem:[%s6 + $0x8] sm:$0xff]
        %v617 = vld [vmem:[%s6 + $0x10] sm:$0xff]
        %v618 = vld [vmem:[%s6 + $0x18] sm:$0xff]
        %v619 = vld [vmem:[%s6 + $0x20] sm:$0xff]
        %v620 = vld [vmem:[%s6 + $0x28] sm:$0xff]
        %v621 = vld [vmem:[%s6 + $0x30] sm:$0xff]
        %v622 = vld [vmem:[%s6 + $0x38] sm:$0xff]
        %v623 = vld [vmem:[%s6 + $0x40] sm:$0xff]
        %v624 = vld [vmem:[%s6 + $0x48] sm:$0xff]
        %v625 = vld [vmem:[%s6 + $0x50] sm:$0xff]
        %v626 = vld [vmem:[%s6 + $0x58] sm:$0xff]
        %v627 = vld [vmem:[%s6 + $0x60] sm:$0xff]
        %v628 = vld [vmem:[%s6 + $0x68] sm:$0xff]
        %v629 = vld [vmem:[%s6 + $0x70] sm:$0xff]
        %v630 = vld [vmem:[%s6 + $0x78] sm:$0xff]
        %v631 = vld [vmem:[%s7] sm:$0x3]
        %v633 = vperm.slane %v631, 0
        %v634 = vperm.slane %v631, 1
        %v640 = vunpack.c.l.b16 %v612
        %v641 = vunpack.c.l.b16 %v613
        %v642 = vunpack.c.l.b16 %v614
        %v643 = vpack.c.b16 %v641, %v640
        %v644 = vpack.c.b16 %v642, %v642
        %v663 = vunpack.c.l.b16 %v615
        %v664 = vunpack.c.h.b16 %v615
        %v665 = vunpack.c.l.b16 %v616
        %v666 = vunpack.c.h.b16 %v616
        %v667 = vunpack.c.l.b16 %v617
        %v668 = vunpack.c.h.b16 %v617
        %v669 = vunpack.c.l.b16 %v618
        %v670 = vunpack.c.h.b16 %v618
        %v671 = vunpack.c.l.b16 %v619
        %v672 = vunpack.c.h.b16 %v619
        %v673 = vunpack.c.l.b16 %v620
        %v674 = vunpack.c.h.b16 %v620
        %v675 = vunpack.c.l.b16 %v621
        %v676 = vunpack.c.h.b16 %v621
        %v677 = vunpack.c.l.b16 %v622
        %v678 = vunpack.c.h.b16 %v622
        %v679 = vunpack.c.l.b16 %v623
        %v680 = vunpack.c.h.b16 %v623
        %v681 = vunpack.c.l.b16 %v624
        %v682 = vunpack.c.h.b16 %v624
        %v683 = vunpack.c.l.b16 %v625
        %v684 = vunpack.c.h.b16 %v625
        %v685 = vunpack.c.l.b16 %v626
        %v686 = vunpack.c.h.b16 %v626
        %v687 = vunpack.c.l.b16 %v627
        %v688 = vunpack.c.h.b16 %v627
        %v689 = vunpack.c.l.b16 %v628
        %v690 = vunpack.c.h.b16 %v628
        %v691 = vunpack.c.l.b16 %v629
        %v692 = vunpack.c.h.b16 %v629
        %v693 = vunpack.c.l.b16 %v630
        %v694 = vunpack.c.h.b16 %v630
        %v695 = vpack.c.b16 %v665, %v663
        %v696 = vpack.c.b16 %v666, %v664
        %v697 = vpack.c.b16 %v669, %v667
        %v698 = vpack.c.b16 %v670, %v668
        %v699 = vpack.c.b16 %v673, %v671
        %v700 = vpack.c.b16 %v674, %v672
        %v701 = vpack.c.b16 %v677, %v675
        %v702 = vpack.c.b16 %v678, %v676
        %v703 = vpack.c.b16 %v681, %v679
        %v704 = vpack.c.b16 %v682, %v680
        %v705 = vpack.c.b16 %v685, %v683
        %v706 = vpack.c.b16 %v686, %v684
        %v707 = vpack.c.b16 %v689, %v687
        %v708 = vpack.c.b16 %v690, %v688
        %v709 = vpack.c.b16 %v693, %v691
        %v710 = vpack.c.b16 %v694, %v692
        %727 = vmatpush.bf16.msra.mxu0 %v709
        %728 = vmatpush.bf16.msra.mxu0 %v707
        %729 = vmatpush.bf16.msra.mxu0 %v705
        %730 = vmatpush.bf16.msra.mxu0 %v703
        %731 = vmatpush.bf16.msra.mxu0 %v701
        %732 = vmatpush.bf16.msra.mxu0 %v699
        %733 = vmatpush.bf16.msra.mxu0 %v697
        %734 = vmatpush.bf16.msra.mxu0 %v695
        %735 = vmatmul.bf16.gmra.mxu0 %v643
        %v736 = vpop.f32.mrf.mxu0
        %v737 = vadd.f32 %v633, %v736
        %v738 = vpop.f32.mrf.mxu0
        %v739 = vadd.f32 %v633, %v738
        %740 = vmatmul.bf16.gmra.mxu0 %v644
        %v741 = vpop.f32.mrf.mxu0
        %v742 = vadd.f32 %v633, %v741
        %v743 = vpop.f32.mrf.mxu0
        %744 = vdwg.mxu0
        %745 = vmatpush.bf16.msra.mxu0 %v710
        %746 = vmatpush.bf16.msra.mxu0 %v708
        %747 = vmatpush.bf16.msra.mxu0 %v706
        %748 = vmatpush.bf16.msra.mxu0 %v704
        %749 = vmatpush.bf16.msra.mxu0 %v702
        %750 = vmatpush.bf16.msra.mxu0 %v700
        %751 = vmatpush.bf16.msra.mxu0 %v698
        %752 = vmatpush.bf16.msra.mxu0 %v696
        %753 = vmatmul.bf16.gmra.mxu0 %v643
        %v754 = vpop.f32.mrf.mxu0
        %v755 = vadd.f32 %v634, %v754
        %v756 = vpop.f32.mrf.mxu0
        %v757 = vadd.f32 %v634, %v756
        %758 = vmatmul.bf16.gmra.mxu0 %v644
        %v759 = vpop.f32.mrf.mxu0
        %v760 = vadd.f32 %v634, %v759
        %v761 = vpop.f32.mrf.mxu0
        %762 = vdwg.mxu0
        %v763 = vmax.f32 %v737, 0.0
        %v764 = vmax.f32 %v755, 0.0
        %v765 = vmax.f32 %v739, 0.0
        %v766 = vmax.f32 %v757, 0.0
        %v767 = vmax.f32 %v742, 0.0
        %v768 = vmax.f32 %v760, 0.0
        %v769 = vpack.c.bf16 %v765, %v763
        %v770 = vpack.c.bf16 %v766, %v764
        %v771 = vpack.c.bf16 %v767, %v767
        %v772 = vpack.c.bf16 %v768, %v768
        %v773 = vld [vmem:[%s8] sm:$0xff]
        %v774 = vld [vmem:[%s8 + $0x8] sm:$0xff]
        %v775 = vld [vmem:[%s8 + $0x10] sm:$0xff]
        %v776 = vld [vmem:[%s8 + $0x18] sm:$0xff]
        %v777 = vld [vmem:[%s8 + $0x20] sm:$0xff]
        %v778 = vld [vmem:[%s8 + $0x28] sm:$0xff]
        %v779 = vld [vmem:[%s8 + $0x30] sm:$0xff]
        %v780 = vld [vmem:[%s8 + $0x38] sm:$0xff]
        %v781 = vld [vmem:[%s8 + $0x40] sm:$0xff]
        %v782 = vld [vmem:[%s8 + $0x48] sm:$0xff]
        %v783 = vld [vmem:[%s8 + $0x50] sm:$0xff]
        %v784 = vld [vmem:[%s8 + $0x58] sm:$0xff]
        %v785 = vld [vmem:[%s8 + $0x60] sm:$0xff]
        %v786 = vld [vmem:[%s8 + $0x68] sm:$0xff]
        %v787 = vld [vmem:[%s8 + $0x70] sm:$0xff]
        %v788 = vld [vmem:[%s8 + $0x78] sm:$0xff]
        %v789 = vld [vmem:[%s8 + $0x80] sm:$0xff]
        %v790 = vld [vmem:[%s8 + $0x88] sm:$0xff]
        %v791 = vld [vmem:[%s8 + $0x90] sm:$0xff]
        %v792 = vld [vmem:[%s8 + $0x98] sm:$0xff]
        %v793 = vld [vmem:[%s8 + $0xa0] sm:$0xff]
        %v794 = vld [vmem:[%s8 + $0xa8] sm:$0xff]
        %v795 = vld [vmem:[%s8 + $0xb0] sm:$0xff]
        %v796 = vld [vmem:[%s8 + $0xb8] sm:$0xff]
        %v797 = vld [vmem:[%s8 + $0xc0] sm:$0xff]
        %v798 = vld [vmem:[%s8 + $0xc8] sm:$0xff]
        %v799 = vld [vmem:[%s8 + $0xd0] sm:$0xff]
        %v800 = vld [vmem:[%s8 + $0xd8] sm:$0xff]
        %v801 = vld [vmem:[%s8 + $0xe0] sm:$0xff]
        %v802 = vld [vmem:[%s8 + $0xe8] sm:$0xff]
        %v803 = vld [vmem:[%s8 + $0xf0] sm:$0xff]
        %v804 = vld [vmem:[%s8 + $0xf8] sm:$0xff]
        %v805 = vld [vmem:[%s9] sm:$0x3]
        %v807 = vperm.slane %v805, 0
        %v808 = vperm.slane %v805, 1
        %v843 = vunpack.c.l.b16 %v773
        %v844 = vunpack.c.h.b16 %v773
        %v845 = vunpack.c.l.b16 %v774
        %v846 = vunpack.c.h.b16 %v774
        %v847 = vunpack.c.l.b16 %v775
        %v848 = vunpack.c.h.b16 %v775
        %v849 = vunpack.c.l.b16 %v776
        %v850 = vunpack.c.h.b16 %v776
        %v851 = vunpack.c.l.b16 %v777
        %v852 = vunpack.c.h.b16 %v777
        %v853 = vunpack.c.l.b16 %v778
        %v854 = vunpack.c.h.b16 %v778
        %v855 = vunpack.c.l.b16 %v779
        %v856 = vunpack.c.h.b16 %v779
        %v857 = vunpack.c.l.b16 %v780
        %v858 = vunpack.c.h.b16 %v780
        %v859 = vunpack.c.l.b16 %v781
        %v860 = vunpack.c.h.b16 %v781
        %v861 = vunpack.c.l.b16 %v782
        %v862 = vunpack.c.h.b16 %v782
        %v863 = vunpack.c.l.b16 %v783
        %v864 = vunpack.c.h.b16 %v783
        %v865 = vunpack.c.l.b16 %v784
        %v866 = vunpack.c.h.b16 %v784
        %v867 = vunpack.c.l.b16 %v785
        %v868 = vunpack.c.h.b16 %v785
        %v869 = vunpack.c.l.b16 %v786
        %v870 = vunpack.c.h.b16 %v786
        %v871 = vunpack.c.l.b16 %v787
        %v872 = vunpack.c.h.b16 %v787
        %v873 = vunpack.c.l.b16 %v788
        %v874 = vunpack.c.h.b16 %v788
        %v875 = vunpack.c.l.b16 %v789
        %v876 = vunpack.c.h.b16 %v789
        %v877 = vunpack.c.l.b16 %v790
        %v878 = vunpack.c.h.b16 %v790
        %v879 = vunpack.c.l.b16 %v791
        %v880 = vunpack.c.h.b16 %v791
        %v881 = vunpack.c.l.b16 %v792
        %v882 = vunpack.c.h.b16 %v792
        %v883 = vunpack.c.l.b16 %v793
        %v884 = vunpack.c.h.b16 %v793
        %v885 = vunpack.c.l.b16 %v794
        %v886 = vunpack.c.h.b16 %v794
        %v887 = vunpack.c.l.b16 %v795
        %v888 = vunpack.c.h.b16 %v795
        %v889 = vunpack.c.l.b16 %v796
        %v890 = vunpack.c.h.b16 %v796
        %v891 = vunpack.c.l.b16 %v797
        %v892 = vunpack.c.h.b16 %v797
        %v893 = vunpack.c.l.b16 %v798
        %v894 = vunpack.c.h.b16 %v798
        %v895 = vunpack.c.l.b16 %v799
        %v896 = vunpack.c.h.b16 %v799
        %v897 = vunpack.c.l.b16 %v800
        %v898 = vunpack.c.h.b16 %v800
        %v899 = vunpack.c.l.b16 %v801
        %v900 = vunpack.c.h.b16 %v801
        %v901 = vunpack.c.l.b16 %v802
        %v902 = vunpack.c.h.b16 %v802
        %v903 = vunpack.c.l.b16 %v803
        %v904 = vunpack.c.h.b16 %v803
        %v905 = vunpack.c.l.b16 %v804
        %v906 = vunpack.c.h.b16 %v804
        %v907 = vpack.c.b16 %v845, %v843
        %v908 = vpack.c.b16 %v846, %v844
        %v909 = vpack.c.b16 %v849, %v847
        %v910 = vpack.c.b16 %v850, %v848
        %v911 = vpack.c.b16 %v853, %v851
        %v912 = vpack.c.b16 %v854, %v852
        %v913 = vpack.c.b16 %v857, %v855
        %v914 = vpack.c.b16 %v858, %v856
        %v915 = vpack.c.b16 %v861, %v859
        %v916 = vpack.c.b16 %v862, %v860
        %v917 = vpack.c.b16 %v865, %v863
        %v918 = vpack.c.b16 %v866, %v864
        %v919 = vpack.c.b16 %v869, %v867
        %v920 = vpack.c.b16 %v870, %v868
        %v921 = vpack.c.b16 %v873, %v871
        %v922 = vpack.c.b16 %v874, %v872
        %v923 = vpack.c.b16 %v877, %v875
        %v924 = vpack.c.b16 %v878, %v876
        %v925 = vpack.c.b16 %v881, %v879
        %v926 = vpack.c.b16 %v882, %v880
        %v927 = vpack.c.b16 %v885, %v883
        %v928 = vpack.c.b16 %v886, %v884
        %v929 = vpack.c.b16 %v889, %v887
        %v930 = vpack.c.b16 %v890, %v888
        %v931 = vpack.c.b16 %v893, %v891
        %v932 = vpack.c.b16 %v894, %v892
        %v933 = vpack.c.b16 %v897, %v895
        %v934 = vpack.c.b16 %v898, %v896
        %v935 = vpack.c.b16 %v901, %v899
        %v936 = vpack.c.b16 %v902, %v900
        %v937 = vpack.c.b16 %v905, %v903
        %v938 = vpack.c.b16 %v906, %v904
        %971 = vmatpush.bf16.msra.mxu0 %v921
        %972 = vmatpush.bf16.msra.mxu0 %v919
        %973 = vmatpush.bf16.msra.mxu0 %v917
        %974 = vmatpush.bf16.msra.mxu0 %v915
        %975 = vmatpush.bf16.msra.mxu0 %v913
        %976 = vmatpush.bf16.msra.mxu0 %v911
        %977 = vmatpush.bf16.msra.mxu0 %v909
        %978 = vmatpush.bf16.msra.mxu0 %v907
        %979 = vmatmul.bf16.gmra.mxu0 %v769
        %v980 = vpop.f32.mrf.mxu0
        %v981 = vadd.f32 %v807, %v980
        %v982 = vpop.f32.mrf.mxu0
        %v983 = vadd.f32 %v807, %v982
        %984 = vmatmul.bf16.gmra.mxu0 %v771
        %v985 = vpop.f32.mrf.mxu0
        %v986 = vadd.f32 %v807, %v985
        %v987 = vpop.f32.mrf.mxu0
        %988 = vdwg.mxu0
        %989 = vmatpush.bf16.msra.mxu0 %v937
        %990 = vmatpush.bf16.msra.mxu0 %v935
        %991 = vmatpush.bf16.msra.mxu0 %v933
        %992 = vmatpush.bf16.msra.mxu0 %v931
        %993 = vmatpush.bf16.msra.mxu0 %v929
        %994 = vmatpush.bf16.msra.mxu0 %v927
        %995 = vmatpush.bf16.msra.mxu0 %v925
        %996 = vmatpush.bf16.msra.mxu0 %v923
        %997 = vmatmul.bf16.gmra.mxu0 %v770
        %v998 = vpop.f32.mrf.mxu0
        %v999 = vadd.f32 %v981, %v998
        %v1000 = vpop.f32.mrf.mxu0
        %v1001 = vadd.f32 %v983, %v1000
        %1002 = vmatmul.bf16.gmra.mxu0 %v772
        %v1003 = vpop.f32.mrf.mxu0
        %v1004 = vadd.f32 %v986, %v1003
        %v1005 = vpop.f32.mrf.mxu0
        %1006 = vdwg.mxu0
        %1007 = vmatpush.bf16.msra.mxu0 %v922
        %1008 = vmatpush.bf16.msra.mxu0 %v920
        %1009 = vmatpush.bf16.msra.mxu0 %v918
        %1010 = vmatpush.bf16.msra.mxu0 %v916
        %1011 = vmatpush.bf16.msra.mxu0 %v914
        %1012 = vmatpush.bf16.msra.mxu0 %v912
        %1013 = vmatpush.bf16.msra.mxu0 %v910
        %1014 = vmatpush.bf16.msra.mxu0 %v908
        %1015 = vmatmul.bf16.gmra.mxu0 %v769
        %v1016 = vpop.f32.mrf.mxu0
        %v1017 = vadd.f32 %v808, %v1016
        %v1018 = vpop.f32.mrf.mxu0
        %v1019 = vadd.f32 %v808, %v1018
        %1020 = vmatmul.bf16.gmra.mxu0 %v771
        %v1021 = vpop.f32.mrf.mxu0
        %v1022 = vadd.f32 %v808, %v1021
        %v1023 = vpop.f32.mrf.mxu0
        %1024 = vdwg.mxu0
        %1025 = vmatpush.bf16.msra.mxu0 %v938
        %1026 = vmatpush.bf16.msra.mxu0 %v936
        %1027 = vmatpush.bf16.msra.mxu0 %v934
        %1028 = vmatpush.bf16.msra.mxu0 %v932
        %1029 = vmatpush.bf16.msra.mxu0 %v930
        %1030 = vmatpush.bf16.msra.mxu0 %v928
        %1031 = vmatpush.bf16.msra.mxu0 %v926
        %1032 = vmatpush.bf16.msra.mxu0 %v924
        %1033 = vmatmul.bf16.gmra.mxu0 %v770
        %v1034 = vpop.f32.mrf.mxu0
        %v1035 = vadd.f32 %v1017, %v1034
        %v1036 = vpop.f32.mrf.mxu0
        %v1037 = vadd.f32 %v1019, %v1036
        %1038 = vmatmul.bf16.gmra.mxu0 %v772
        %v1039 = vpop.f32.mrf.mxu0
        %v1040 = vadd.f32 %v1022, %v1039
        %v1041 = vpop.f32.mrf.mxu0
        %1042 = vdwg.mxu0
        %v1043 = vpack.c.bf16 %v610, %v610
        %v1044 = vpack.c.bf16 %v611, %v611
        %v1045 = vld [vmem:[%s10] sm:$0xff]
        %v1046 = vld [vmem:[%s10 + $0x8] sm:$0xff]
        %v1047 = vld [vmem:[%s10 + $0x10] sm:$0xff]
        %v1048 = vld [vmem:[%s10 + $0x18] sm:$0xff]
        %v1049 = vld [vmem:[%s10 + $0x20] sm:$0xff]
        %v1050 = vld [vmem:[%s10 + $0x28] sm:$0xff]
        %v1051 = vld [vmem:[%s10 + $0x30] sm:$0xff]
        %v1052 = vld [vmem:[%s10 + $0x38] sm:$0xff]
        %v1053 = vld [vmem:[%s10 + $0x40] sm:$0xff]
        %v1054 = vld [vmem:[%s10 + $0x48] sm:$0xff]
        %v1055 = vld [vmem:[%s10 + $0x50] sm:$0xff]
        %v1056 = vld [vmem:[%s10 + $0x58] sm:$0xff]
        %v1057 = vld [vmem:[%s10 + $0x60] sm:$0xff]
        %v1058 = vld [vmem:[%s10 + $0x68] sm:$0xff]
        %v1059 = vld [vmem:[%s10 + $0x70] sm:$0xff]
        %v1060 = vld [vmem:[%s10 + $0x78] sm:$0xff]
        %v1061 = vld [vmem:[%s11] sm:$0x3]
        %v1063 = vperm.slane %v1061, 0
        %v1064 = vperm.slane %v1061, 1
        %v1069 = vunpack.c.l.b16 %v1043
        %v1070 = vunpack.c.l.b16 %v1044
        %v1071 = vpack.c.b16 %v1070, %v1069
        %v1089 = vunpack.c.l.b16 %v1045
        %v1090 = vunpack.c.h.b16 %v1045
        %v1091 = vunpack.c.l.b16 %v1046
        %v1092 = vunpack.c.h.b16 %v1046
        %v1093 = vunpack.c.l.b16 %v1047
        %v1094 = vunpack.c.h.b16 %v1047
        %v1095 = vunpack.c.l.b16 %v1048
        %v1096 = vunpack.c.h.b16 %v1048
        %v1097 = vunpack.c.l.b16 %v1049
        %v1098 = vunpack.c.h.b16 %v1049
        %v1099 = vunpack.c.l.b16 %v1050
        %v1100 = vunpack.c.h.b16 %v1050
        %v1101 = vunpack.c.l.b16 %v1051
        %v1102 = vunpack.c.h.b16 %v1051
        %v1103 = vunpack.c.l.b16 %v1052
        %v1104 = vunpack.c.h.b16 %v1052
        %v1105 = vunpack.c.l.b16 %v1053
        %v1106 = vunpack.c.h.b16 %v1053
        %v1107 = vunpack.c.l.b16 %v1054
        %v1108 = vunpack.c.h.b16 %v1054
        %v1109 = vunpack.c.l.b16 %v1055
        %v1110 = vunpack.c.h.b16 %v1055
        %v1111 = vunpack.c.l.b16 %v1056
        %v1112 = vunpack.c.h.b16 %v1056
        %v1113 = vunpack.c.l.b16 %v1057
        %v1114 = vunpack.c.h.b16 %v1057
        %v1115 = vunpack.c.l.b16 %v1058
        %v1116 = vunpack.c.h.b16 %v1058
        %v1117 = vunpack.c.l.b16 %v1059
        %v1118 = vunpack.c.h.b16 %v1059
        %v1119 = vunpack.c.l.b16 %v1060
        %v1120 = vunpack.c.h.b16 %v1060
        %v1121 = vpack.c.b16 %v1091, %v1089
        %v1122 = vpack.c.b16 %v1092, %v1090
        %v1123 = vpack.c.b16 %v1095, %v1093
        %v1124 = vpack.c.b16 %v1096, %v1094
        %v1125 = vpack.c.b16 %v1099, %v1097
        %v1126 = vpack.c.b16 %v1100, %v1098
        %v1127 = vpack.c.b16 %v1103, %v1101
        %v1128 = vpack.c.b16 %v1104, %v1102
        %v1129 = vpack.c.b16 %v1107, %v1105
        %v1130 = vpack.c.b16 %v1108, %v1106
        %v1131 = vpack.c.b16 %v1111, %v1109
        %v1132 = vpack.c.b16 %v1112, %v1110
        %v1133 = vpack.c.b16 %v1115, %v1113
        %v1134 = vpack.c.b16 %v1116, %v1114
        %v1135 = vpack.c.b16 %v1119, %v1117
        %v1136 = vpack.c.b16 %v1120, %v1118
        %1153 = vmatpush.bf16.msra.mxu0 %v1135
        %1154 = vmatpush.bf16.msra.mxu0 %v1133
        %1155 = vmatpush.bf16.msra.mxu0 %v1131
        %1156 = vmatpush.bf16.msra.mxu0 %v1129
        %1157 = vmatpush.bf16.msra.mxu0 %v1127
        %1158 = vmatpush.bf16.msra.mxu0 %v1125
        %1159 = vmatpush.bf16.msra.mxu0 %v1123
        %1160 = vmatpush.bf16.msra.mxu0 %v1121
        %1161 = vmatmul.bf16.gmra.mxu0 %v1071
        %v1162 = vpop.f32.mrf.mxu0
        %v1163 = vadd.f32 %v1063, %v1162
        %v1164 = vpop.f32.mrf.mxu0
        %v1165 = vadd.f32 %v1063, %v1164
        %1166 = vdwg.mxu0
        %1167 = vmatpush.bf16.msra.mxu0 %v1136
        %1168 = vmatpush.bf16.msra.mxu0 %v1134
        %1169 = vmatpush.bf16.msra.mxu0 %v1132
        %1170 = vmatpush.bf16.msra.mxu0 %v1130
        %1171 = vmatpush.bf16.msra.mxu0 %v1128
        %1172 = vmatpush.bf16.msra.mxu0 %v1126
        %1173 = vmatpush.bf16.msra.mxu0 %v1124
        %1174 = vmatpush.bf16.msra.mxu0 %v1122
        %1175 = vmatmul.bf16.gmra.mxu0 %v1071
        %v1176 = vpop.f32.mrf.mxu0
        %v1177 = vadd.f32 %v1064, %v1176
        %v1178 = vpop.f32.mrf.mxu0
        %v1179 = vadd.f32 %v1064, %v1178
        %1180 = vdwg.mxu0
        %v1181 = vmax.f32 %v1163, 0.0
        %v1182 = vmax.f32 %v1177, 0.0
        %v1183 = vmax.f32 %v1165, 0.0
        %v1184 = vmax.f32 %v1179, 0.0
        %v1185 = vpack.c.bf16 %v1183, %v1181
        %v1186 = vpack.c.bf16 %v1184, %v1182
        %v1187 = vld [vmem:[%s12] sm:$0xff]
        %v1188 = vld [vmem:[%s12 + $0x8] sm:$0xff]
        %v1189 = vld [vmem:[%s12 + $0x10] sm:$0xff]
        %v1190 = vld [vmem:[%s12 + $0x18] sm:$0xff]
        %v1191 = vld [vmem:[%s12 + $0x20] sm:$0xff]
        %v1192 = vld [vmem:[%s12 + $0x28] sm:$0xff]
        %v1193 = vld [vmem:[%s12 + $0x30] sm:$0xff]
        %v1194 = vld [vmem:[%s12 + $0x38] sm:$0xff]
        %v1195 = vld [vmem:[%s12 + $0x40] sm:$0xff]
        %v1196 = vld [vmem:[%s12 + $0x48] sm:$0xff]
        %v1197 = vld [vmem:[%s12 + $0x50] sm:$0xff]
        %v1198 = vld [vmem:[%s12 + $0x58] sm:$0xff]
        %v1199 = vld [vmem:[%s12 + $0x60] sm:$0xff]
        %v1200 = vld [vmem:[%s12 + $0x68] sm:$0xff]
        %v1201 = vld [vmem:[%s12 + $0x70] sm:$0xff]
        %v1202 = vld [vmem:[%s12 + $0x78] sm:$0xff]
        %v1203 = vld [vmem:[%s12 + $0x80] sm:$0xff]
        %v1204 = vld [vmem:[%s12 + $0x88] sm:$0xff]
        %v1205 = vld [vmem:[%s12 + $0x90] sm:$0xff]
        %v1206 = vld [vmem:[%s12 + $0x98] sm:$0xff]
        %v1207 = vld [vmem:[%s12 + $0xa0] sm:$0xff]
        %v1208 = vld [vmem:[%s12 + $0xa8] sm:$0xff]
        %v1209 = vld [vmem:[%s12 + $0xb0] sm:$0xff]
        %v1210 = vld [vmem:[%s12 + $0xb8] sm:$0xff]
        %v1211 = vld [vmem:[%s12 + $0xc0] sm:$0xff]
        %v1212 = vld [vmem:[%s12 + $0xc8] sm:$0xff]
        %v1213 = vld [vmem:[%s12 + $0xd0] sm:$0xff]
        %v1214 = vld [vmem:[%s12 + $0xd8] sm:$0xff]
        %v1215 = vld [vmem:[%s12 + $0xe0] sm:$0xff]
        %v1216 = vld [vmem:[%s12 + $0xe8] sm:$0xff]
        %v1217 = vld [vmem:[%s12 + $0xf0] sm:$0xff]
        %v1218 = vld [vmem:[%s12 + $0xf8] sm:$0xff]
        %v1219 = vld [vmem:[%s13] sm:$0x3]
        %v1221 = vperm.slane %v1219, 0
        %v1222 = vperm.slane %v1219, 1
        %v1257 = vunpack.c.l.b16 %v1187
        %v1258 = vunpack.c.h.b16 %v1187
        %v1259 = vunpack.c.l.b16 %v1188
        %v1260 = vunpack.c.h.b16 %v1188
        %v1261 = vunpack.c.l.b16 %v1189
        %v1262 = vunpack.c.h.b16 %v1189
        %v1263 = vunpack.c.l.b16 %v1190
        %v1264 = vunpack.c.h.b16 %v1190
        %v1265 = vunpack.c.l.b16 %v1191
        %v1266 = vunpack.c.h.b16 %v1191
        %v1267 = vunpack.c.l.b16 %v1192
        %v1268 = vunpack.c.h.b16 %v1192
        %v1269 = vunpack.c.l.b16 %v1193
        %v1270 = vunpack.c.h.b16 %v1193
        %v1271 = vunpack.c.l.b16 %v1194
        %v1272 = vunpack.c.h.b16 %v1194
        %v1273 = vunpack.c.l.b16 %v1195
        %v1274 = vunpack.c.h.b16 %v1195
        %v1275 = vunpack.c.l.b16 %v1196
        %v1276 = vunpack.c.h.b16 %v1196
        %v1277 = vunpack.c.l.b16 %v1197
        %v1278 = vunpack.c.h.b16 %v1197
        %v1279 = vunpack.c.l.b16 %v1198
        %v1280 = vunpack.c.h.b16 %v1198
        %v1281 = vunpack.c.l.b16 %v1199
        %v1282 = vunpack.c.h.b16 %v1199
        %v1283 = vunpack.c.l.b16 %v1200
        %v1284 = vunpack.c.h.b16 %v1200
        %v1285 = vunpack.c.l.b16 %v1201
        %v1286 = vunpack.c.h.b16 %v1201
        %v1287 = vunpack.c.l.b16 %v1202
        %v1288 = vunpack.c.h.b16 %v1202
        %v1289 = vunpack.c.l.b16 %v1203
        %v1290 = vunpack.c.h.b16 %v1203
        %v1291 = vunpack.c.l.b16 %v1204
        %v1292 = vunpack.c.h.b16 %v1204
        %v1293 = vunpack.c.l.b16 %v1205
        %v1294 = vunpack.c.h.b16 %v1205
        %v1295 = vunpack.c.l.b16 %v1206
        %v1296 = vunpack.c.h.b16 %v1206
        %v1297 = vunpack.c.l.b16 %v1207
        %v1298 = vunpack.c.h.b16 %v1207
        %v1299 = vunpack.c.l.b16 %v1208
        %v1300 = vunpack.c.h.b16 %v1208
        %v1301 = vunpack.c.l.b16 %v1209
        %v1302 = vunpack.c.h.b16 %v1209
        %v1303 = vunpack.c.l.b16 %v1210
        %v1304 = vunpack.c.h.b16 %v1210
        %v1305 = vunpack.c.l.b16 %v1211
        %v1306 = vunpack.c.h.b16 %v1211
        %v1307 = vunpack.c.l.b16 %v1212
        %v1308 = vunpack.c.h.b16 %v1212
        %v1309 = vunpack.c.l.b16 %v1213
        %v1310 = vunpack.c.h.b16 %v1213
        %v1311 = vunpack.c.l.b16 %v1214
        %v1312 = vunpack.c.h.b16 %v1214
        %v1313 = vunpack.c.l.b16 %v1215
        %v1314 = vunpack.c.h.b16 %v1215
        %v1315 = vunpack.c.l.b16 %v1216
        %v1316 = vunpack.c.h.b16 %v1216
        %v1317 = vunpack.c.l.b16 %v1217
        %v1318 = vunpack.c.h.b16 %v1217
        %v1319 = vunpack.c.l.b16 %v1218
        %v1320 = vunpack.c.h.b16 %v1218
        %v1321 = vpack.c.b16 %v1259, %v1257
        %v1322 = vpack.c.b16 %v1260, %v1258
        %v1323 = vpack.c.b16 %v1263, %v1261
        %v1324 = vpack.c.b16 %v1264, %v1262
        %v1325 = vpack.c.b16 %v1267, %v1265
        %v1326 = vpack.c.b16 %v1268, %v1266
        %v1327 = vpack.c.b16 %v1271, %v1269
        %v1328 = vpack.c.b16 %v1272, %v1270
        %v1329 = vpack.c.b16 %v1275, %v1273
        %v1330 = vpack.c.b16 %v1276, %v1274
        %v1331 = vpack.c.b16 %v1279, %v1277
        %v1332 = vpack.c.b16 %v1280, %v1278
        %v1333 = vpack.c.b16 %v1283, %v1281
        %v1334 = vpack.c.b16 %v1284, %v1282
        %v1335 = vpack.c.b16 %v1287, %v1285
        %v1336 = vpack.c.b16 %v1288, %v1286
        %v1337 = vpack.c.b16 %v1291, %v1289
        %v1338 = vpack.c.b16 %v1292, %v1290
        %v1339 = vpack.c.b16 %v1295, %v1293
        %v1340 = vpack.c.b16 %v1296, %v1294
        %v1341 = vpack.c.b16 %v1299, %v1297
        %v1342 = vpack.c.b16 %v1300, %v1298
        %v1343 = vpack.c.b16 %v1303, %v1301
        %v1344 = vpack.c.b16 %v1304, %v1302
        %v1345 = vpack.c.b16 %v1307, %v1305
        %v1346 = vpack.c.b16 %v1308, %v1306
        %v1347 = vpack.c.b16 %v1311, %v1309
        %v1348 = vpack.c.b16 %v1312, %v1310
        %v1349 = vpack.c.b16 %v1315, %v1313
        %v1350 = vpack.c.b16 %v1316, %v1314
        %v1351 = vpack.c.b16 %v1319, %v1317
        %v1352 = vpack.c.b16 %v1320, %v1318
        %1385 = vmatpush.bf16.msra.mxu0 %v1335
        %1386 = vmatpush.bf16.msra.mxu0 %v1333
        %1387 = vmatpush.bf16.msra.mxu0 %v1331
        %1388 = vmatpush.bf16.msra.mxu0 %v1329
        %1389 = vmatpush.bf16.msra.mxu0 %v1327
        %1390 = vmatpush.bf16.msra.mxu0 %v1325
        %1391 = vmatpush.bf16.msra.mxu0 %v1323
        %1392 = vmatpush.bf16.msra.mxu0 %v1321
        %1393 = vmatmul.bf16.gmra.mxu0 %v1185
        %v1394 = vpop.f32.mrf.mxu0
        %v1395 = vadd.f32 %v1221, %v1394
        %v1396 = vpop.f32.mrf.mxu0
        %v1397 = vadd.f32 %v1221, %v1396
        %1398 = vdwg.mxu0
        %1399 = vmatpush.bf16.msra.mxu0 %v1351
        %1400 = vmatpush.bf16.msra.mxu0 %v1349
        %1401 = vmatpush.bf16.msra.mxu0 %v1347
        %1402 = vmatpush.bf16.msra.mxu0 %v1345
        %1403 = vmatpush.bf16.msra.mxu0 %v1343
        %1404 = vmatpush.bf16.msra.mxu0 %v1341
        %1405 = vmatpush.bf16.msra.mxu0 %v1339
        %1406 = vmatpush.bf16.msra.mxu0 %v1337
        %1407 = vmatmul.bf16.gmra.mxu0 %v1186
        %v1408 = vpop.f32.mrf.mxu0
        %v1409 = vadd.f32 %v1395, %v1408
        %v1410 = vpop.f32.mrf.mxu0
        %v1411 = vadd.f32 %v1397, %v1410
        %1412 = vdwg.mxu0
        %1413 = vmatpush.bf16.msra.mxu0 %v1336
        %1414 = vmatpush.bf16.msra.mxu0 %v1334
        %1415 = vmatpush.bf16.msra.mxu0 %v1332
        %1416 = vmatpush.bf16.msra.mxu0 %v1330
        %1417 = vmatpush.bf16.msra.mxu0 %v1328
        %1418 = vmatpush.bf16.msra.mxu0 %v1326
        %1419 = vmatpush.bf16.msra.mxu0 %v1324
        %1420 = vmatpush.bf16.msra.mxu0 %v1322
        %1421 = vmatmul.bf16.gmra.mxu0 %v1185
        %v1422 = vpop.f32.mrf.mxu0
        %v1423 = vadd.f32 %v1222, %v1422
        %v1424 = vpop.f32.mrf.mxu0
        %v1425 = vadd.f32 %v1222, %v1424
        %1426 = vdwg.mxu0
        %1427 = vmatpush.bf16.msra.mxu0 %v1352
        %1428 = vmatpush.bf16.msra.mxu0 %v1350
        %1429 = vmatpush.bf16.msra.mxu0 %v1348
        %1430 = vmatpush.bf16.msra.mxu0 %v1346
        %1431 = vmatpush.bf16.msra.mxu0 %v1344
        %1432 = vmatpush.bf16.msra.mxu0 %v1342
        %1433 = vmatpush.bf16.msra.mxu0 %v1340
        %1434 = vmatpush.bf16.msra.mxu0 %v1338
        %1435 = vmatmul.bf16.gmra.mxu0 %v1186
        %v1436 = vpop.f32.mrf.mxu0
        %v1437 = vadd.f32 %v1423, %v1436
        %v1438 = vpop.f32.mrf.mxu0
        %v1439 = vadd.f32 %v1425, %v1438
        %1440 = vdwg.mxu0
        %v1441 = vpack.c.bf16 %v1001, %v999
        %v1442 = vpack.c.bf16 %v1004, %v1004
        %v1443 = vpack.c.bf16 %v1037, %v1035
        %v1444 = vpack.c.bf16 %v1040, %v1040
        %v1445 = vpack.c.bf16 %v1411, %v1409
        %v1446 = vpack.c.bf16 %v1439, %v1437
        %v1447 = vld [vmem:[%s2] sm:$0xf]
        %v1448 = vld [vmem:[%s2 + $0x4] sm:$0xf]
        %v1451 = vunpack.c.l.b16 %v1447
        %v1452 = vunpack.c.l.b16 %v1448
        %v1453 = vpack.c.b16 %v1452, %v1451
        %vm1454 = vcmask 195584
        %v1456 = vsel %vm1454, %v1453, 0
        %vm1458 = vcmask 1043456
        %v1460 = vsel %vm1458, %v1442, 0
        %1462 = vmatpush.bf16.msra.mxu0 0
        %1463 = vmatpush.bf16.msra.mxu0 0
        %1464 = vmatpush.bf16.msra.mxu0 0
        %1465 = vmatpush.bf16.msra.mxu0 0
        %1466 = vmatpush.bf16.msra.mxu0 0
        %1467 = vmatpush.bf16.msra.mxu0 0
        %1468 = vmatpush.bf16.msra.mxu0 %v1460
        %1469 = vmatpush.bf16.msra.mxu0 %v1441
        %1470 = vmatmul.bf16.gmra.mxu0 %v1456
        %v1471 = vpop.f32.mrf.mxu0
        %v1472 = vadd.f32 0.0, %v1471
        %v1473 = vpop.f32.mrf.mxu0
        %v1474 = vadd.f32 0.0, %v1473
        %1475 = vdwg.mxu0
        %v1476 = vld [vmem:[%s3] sm:$0xf]
        %v1477 = vld [vmem:[%s3 + $0x4] sm:$0xf]
        %v1480 = vunpack.c.l.b16 %v1476
        %v1481 = vunpack.c.l.b16 %v1477
        %v1482 = vpack.c.b16 %v1481, %v1480
        %v1484 = vsel %vm1454, %v1482, 0
        %v1487 = vsel %vm1458, %v1444, 0
        %1489 = vmatpush.bf16.msra.mxu0 0
        %1490 = vmatpush.bf16.msra.mxu0 0
        %1491 = vmatpush.bf16.msra.mxu0 0
        %1492 = vmatpush.bf16.msra.mxu0 0
        %1493 = vmatpush.bf16.msra.mxu0 0
        %1494 = vmatpush.bf16.msra.mxu0 0
        %1495 = vmatpush.bf16.msra.mxu0 %v1487
        %1496 = vmatpush.bf16.msra.mxu0 %v1443
        %1497 = vmatmul.bf16.gmra.mxu0 %v1484
        %v1498 = vpop.f32.mrf.mxu0
        %v1499 = vadd.f32 0.0, %v1498
        %v1500 = vpop.f32.mrf.mxu0
        %v1501 = vadd.f32 0.0, %v1500
        %1502 = vdwg.mxu0
        %v1503 = vld [vmem:[%s4] sm:$0xf]
        %v1504 = vld [vmem:[%s4 + $0x4] sm:$0xf]
        %v1505 = vld [vmem:[%s4 + $0x8] sm:$0xf]
        %v1509 = vunpack.c.l.b16 %v1503
        %v1510 = vunpack.c.l.b16 %v1504
        %v1511 = vunpack.c.l.b16 %v1505
        %v1512 = vpack.c.b16 %v1510, %v1509
        %v1513 = vpack.c.b16 %v1511, %v1511
        %vm1514 = vcmask 130048
        %v1516 = vsel %vm1514, %v1512, 0
        %v1519 = vsel %vm1514, %v1513, 0
        %1521 = vmatpush.bf16.msra.mxu0 0
        %1522 = vmatpush.bf16.msra.mxu0 0
        %1523 = vmatpush.bf16.msra.mxu0 0
        %1524 = vmatpush.bf16.msra.mxu0 0
        %1525 = vmatpush.bf16.msra.mxu0 0
        %1526 = vmatpush.bf16.msra.mxu0 0
        %1527 = vmatpush.bf16.msra.mxu0 0
        %1528 = vmatpush.bf16.msra.mxu0 %v1445
        %1529 = vmatmul.bf16.gmra.mxu0 %v1516
        %v1530 = vpop.f32.mrf.mxu0
        %v1531 = vadd.f32 0.0, %v1530
        %v1532 = vpop.f32.mrf.mxu0
        %v1533 = vadd.f32 0.0, %v1532
        %1534 = vmatmul.bf16.gmra.mxu0 %v1519
        %v1535 = vpop.f32.mrf.mxu0
        %v1536 = vadd.f32 0.0, %v1535
        %v1537 = vpop.f32.mrf.mxu0
        %1538 = vdwg.mxu0
        %v1539 = vld [vmem:[%s5] sm:$0xf]
        %v1540 = vld [vmem:[%s5 + $0x4] sm:$0xf]
        %v1541 = vld [vmem:[%s5 + $0x8] sm:$0xf]
        %v1545 = vunpack.c.l.b16 %v1539
        %v1546 = vunpack.c.l.b16 %v1540
        %v1547 = vunpack.c.l.b16 %v1541
        %v1548 = vpack.c.b16 %v1546, %v1545
        %v1549 = vpack.c.b16 %v1547, %v1547
        %v1551 = vsel %vm1514, %v1548, 0
        %v1554 = vsel %vm1514, %v1549, 0
        %1556 = vmatpush.bf16.msra.mxu0 0
        %1557 = vmatpush.bf16.msra.mxu0 0
        %1558 = vmatpush.bf16.msra.mxu0 0
        %1559 = vmatpush.bf16.msra.mxu0 0
        %1560 = vmatpush.bf16.msra.mxu0 0
        %1561 = vmatpush.bf16.msra.mxu0 0
        %1562 = vmatpush.bf16.msra.mxu0 0
        %1563 = vmatpush.bf16.msra.mxu0 %v1446
        %1564 = vmatmul.bf16.gmra.mxu0 %v1551
        %v1565 = vpop.f32.mrf.mxu0
        %v1566 = vadd.f32 0.0, %v1565
        %v1567 = vpop.f32.mrf.mxu0
        %v1568 = vadd.f32 0.0, %v1567
        %1569 = vmatmul.bf16.gmra.mxu0 %v1554
        %v1570 = vpop.f32.mrf.mxu0
        %v1571 = vadd.f32 0.0, %v1570
        %v1572 = vpop.f32.mrf.mxu0
        %1573 = vdwg.mxu0
        %1574 = vst [vmem:[#allocation5] sm:$0xf] %v1043
        %1575 = vst [vmem:[#allocation5 + $0xc] sm:$0xf] %v1044
        %v1576 = vpack.c.bf16 %v1472, %v1472
        %v1577 = vpack.c.bf16 %v1474, %v1474
        %1578 = vst [vmem:[#allocation5 + $0x4] sm:$0xf] %v1576
        %1579 = vst [vmem:[#allocation5 + $0x10] sm:$0xf] %v1577
        %v1580 = vpack.c.bf16 %v1499, %v1499
        %v1581 = vpack.c.bf16 %v1501, %v1501
        %1582 = vst [vmem:[#allocation5 + $0x8] sm:$0xf] %v1580
        %1583 = vst [vmem:[#allocation5 + $0x14] sm:$0xf] %v1581
        %v1584 = vld [vmem:[#allocation5] sm:$0xff]
        %v1585 = vld [vmem:[#allocation5 + $0x8] sm:$0xf]
        %v1586 = vld [vmem:[#allocation5 + $0xc] sm:$0xff]
        %v1587 = vld [vmem:[#allocation5 + $0x14] sm:$0xf]
        %v1588 = vld [vmem:[%s14] sm:$0xf]
        %v1589 = vld [vmem:[%s14 + $0x4] sm:$0xf]
        %v1590 = vld [vmem:[%s14 + $0x8] sm:$0xf]
        %v1591 = vld [vmem:[%s14 + $0xc] sm:$0xf]
        %v1592 = vld [vmem:[%s14 + $0x10] sm:$0xf]
        %v1593 = vld [vmem:[%s14 + $0x14] sm:$0xf]
        %v1594 = vld [vmem:[%s14 + $0x18] sm:$0xf]
        %v1595 = vld [vmem:[%s14 + $0x1c] sm:$0xf]
        %v1596 = vld [vmem:[%s14 + $0x20] sm:$0xf]
        %v1597 = vld [vmem:[%s14 + $0x24] sm:$0xf]
        %v1598 = vld [vmem:[%s14 + $0x28] sm:$0xf]
        %v1599 = vld [vmem:[%s14 + $0x2c] sm:$0xf]
        %v1600 = vld [vmem:[%s14 + $0x30] sm:$0xf]
        %v1601 = vld [vmem:[%s14 + $0x34] sm:$0xf]
        %v1602 = vld [vmem:[%s14 + $0x38] sm:$0xf]
        %v1603 = vld [vmem:[%s14 + $0x3c] sm:$0xf]
        %v1604 = vld [vmem:[%s14 + $0x40] sm:$0xf]
        %v1605 = vld [vmem:[%s14 + $0x44] sm:$0xf]
        %v1606 = vld [vmem:[%s14 + $0x48] sm:$0xf]
        %v1607 = vld [vmem:[%s14 + $0x4c] sm:$0xf]
        %v1608 = vld [vmem:[%s14 + $0x50] sm:$0xf]
        %v1609 = vld [vmem:[%s14 + $0x54] sm:$0xf]
        %v1610 = vld [vmem:[%s14 + $0x58] sm:$0xf]
        %v1611 = vld [vmem:[%s14 + $0x5c] sm:$0xf]
        %v1612 = vld [vmem:[%s14 + $0x60] sm:$0xf]
        %v1613 = vld [vmem:[%s14 + $0x64] sm:$0xf]
        %v1614 = vld [vmem:[%s14 + $0x68] sm:$0xf]
        %v1615 = vld [vmem:[%s14 + $0x6c] sm:$0xf]
        %v1616 = vld [vmem:[%s14 + $0x70] sm:$0xf]
        %v1617 = vld [vmem:[%s14 + $0x74] sm:$0xf]
        %v1618 = vld [vmem:[%s14 + $0x78] sm:$0xf]
        %v1619 = vld [vmem:[%s14 + $0x7c] sm:$0xf]
        %v1620 = vld [vmem:[%s14 + $0x80] sm:$0xf]
        %v1621 = vld [vmem:[%s14 + $0x84] sm:$0xf]
        %v1622 = vld [vmem:[%s14 + $0x88] sm:$0xf]
        %v1623 = vld [vmem:[%s14 + $0x8c] sm:$0xf]
        %v1624 = vld [vmem:[%s14 + $0x90] sm:$0xf]
        %v1625 = vld [vmem:[%s14 + $0x94] sm:$0xf]
        %v1626 = vld [vmem:[%s14 + $0x98] sm:$0xf]
        %v1627 = vld [vmem:[%s14 + $0x9c] sm:$0xf]
        %v1628 = vld [vmem:[%s14 + $0xa0] sm:$0xf]
        %v1629 = vld [vmem:[%s14 + $0xa4] sm:$0xf]
        %v1630 = vld [vmem:[%s14 + $0xa8] sm:$0xf]
        %v1631 = vld [vmem:[%s14 + $0xac] sm:$0xf]
        %v1632 = vld [vmem:[%s14 + $0xb0] sm:$0xf]
        %v1633 = vld [vmem:[%s14 + $0xb4] sm:$0xf]
        %v1634 = vld [vmem:[%s14 + $0xb8] sm:$0xf]
        %v1635 = vld [vmem:[%s14 + $0xbc] sm:$0xf]
        %v1636 = vld [vmem:[%s15] sm:$0x1]
        %v1638 = vperm.slane %v1636, 0
        %v1644 = vunpack.c.l.b16 %v1584
        %v1645 = vunpack.c.h.b16 %v1584
        %v1646 = vunpack.c.l.b16 %v1585
        %v1647 = vunpack.c.l.b16 %v1586
        %v1648 = vunpack.c.h.b16 %v1586
        %v1649 = vunpack.c.l.b16 %v1587
        %v1650 = vpack.c.b16 %v1647, %v1644
        %v1651 = vpack.c.b16 %v1648, %v1645
        %v1652 = vpack.c.b16 %v1649, %v1646
        %v1704 = vunpack.c.l.b16 %v1588
        %v1705 = vunpack.c.l.b16 %v1589
        %v1706 = vunpack.c.l.b16 %v1590
        %v1707 = vunpack.c.l.b16 %v1591
        %v1708 = vunpack.c.l.b16 %v1592
        %v1709 = vunpack.c.l.b16 %v1593
        %v1710 = vunpack.c.l.b16 %v1594
        %v1711 = vunpack.c.l.b16 %v1595
        %v1712 = vunpack.c.l.b16 %v1596
        %v1713 = vunpack.c.l.b16 %v1597
        %v1714 = vunpack.c.l.b16 %v1598
        %v1715 = vunpack.c.l.b16 %v1599
        %v1716 = vunpack.c.l.b16 %v1600
        %v1717 = vunpack.c.l.b16 %v1601
        %v1718 = vunpack.c.l.b16 %v1602
        %v1719 = vunpack.c.l.b16 %v1603
        %v1720 = vunpack.c.l.b16 %v1604
        %v1721 = vunpack.c.l.b16 %v1605
        %v1722 = vunpack.c.l.b16 %v1606
        %v1723 = vunpack.c.l.b16 %v1607
        %v1724 = vunpack.c.l.b16 %v1608
        %v1725 = vunpack.c.l.b16 %v1609
        %v1726 = vunpack.c.l.b16 %v1610
        %v1727 = vunpack.c.l.b16 %v1611
        %v1728 = vunpack.c.l.b16 %v1612
        %v1729 = vunpack.c.l.b16 %v1613
        %v1730 = vunpack.c.l.b16 %v1614
        %v1731 = vunpack.c.l.b16 %v1615
        %v1732 = vunpack.c.l.b16 %v1616
        %v1733 = vunpack.c.l.b16 %v1617
        %v1734 = vunpack.c.l.b16 %v1618
        %v1735 = vunpack.c.l.b16 %v1619
        %v1736 = vunpack.c.l.b16 %v1620
        %v1737 = vunpack.c.l.b16 %v1621
        %v1738 = vunpack.c.l.b16 %v1622
        %v1739 = vunpack.c.l.b16 %v1623
        %v1740 = vunpack.c.l.b16 %v1624
        %v1741 = vunpack.c.l.b16 %v1625
        %v1742 = vunpack.c.l.b16 %v1626
        %v1743 = vunpack.c.l.b16 %v1627
        %v1744 = vunpack.c.l.b16 %v1628
        %v1745 = vunpack.c.l.b16 %v1629
        %v1746 = vunpack.c.l.b16 %v1630
        %v1747 = vunpack.c.l.b16 %v1631
        %v1748 = vunpack.c.l.b16 %v1632
        %v1749 = vunpack.c.l.b16 %v1633
        %v1750 = vunpack.c.l.b16 %v1634
        %v1751 = vunpack.c.l.b16 %v1635
        %v1752 = vpack.c.b16 %v1705, %v1704
        %v1753 = vpack.c.b16 %v1707, %v1706
        %v1754 = vpack.c.b16 %v1709, %v1708
        %v1755 = vpack.c.b16 %v1711, %v1710
        %v1756 = vpack.c.b16 %v1713, %v1712
        %v1757 = vpack.c.b16 %v1715, %v1714
        %v1758 = vpack.c.b16 %v1717, %v1716
        %v1759 = vpack.c.b16 %v1719, %v1718
        %v1760 = vpack.c.b16 %v1721, %v1720
        %v1761 = vpack.c.b16 %v1723, %v1722
        %v1762 = vpack.c.b16 %v1725, %v1724
        %v1763 = vpack.c.b16 %v1727, %v1726
        %v1764 = vpack.c.b16 %v1729, %v1728
        %v1765 = vpack.c.b16 %v1731, %v1730
        %v1766 = vpack.c.b16 %v1733, %v1732
        %v1767 = vpack.c.b16 %v1735, %v1734
        %v1768 = vpack.c.b16 %v1737, %v1736
        %v1769 = vpack.c.b16 %v1739, %v1738
        %v1770 = vpack.c.b16 %v1741, %v1740
        %v1771 = vpack.c.b16 %v1743, %v1742
        %v1772 = vpack.c.b16 %v1745, %v1744
        %v1773 = vpack.c.b16 %v1747, %v1746
        %v1774 = vpack.c.b16 %v1749, %v1748
        %v1775 = vpack.c.b16 %v1751, %v1750
        %1800 = vmatpush.bf16.msra.mxu0 %v1759
        %1801 = vmatpush.bf16.msra.mxu0 %v1758
        %1802 = vmatpush.bf16.msra.mxu0 %v1757
        %1803 = vmatpush.bf16.msra.mxu0 %v1756
        %1804 = vmatpush.bf16.msra.mxu0 %v1755
        %1805 = vmatpush.bf16.msra.mxu0 %v1754
        %1806 = vmatpush.bf16.msra.mxu0 %v1753
        %1807 = vmatpush.bf16.msra.mxu0 %v1752
        %1808 = vmatmul.bf16.gmra.mxu0 %v1650
        %v1809 = vpop.f32.mrf.mxu0
        %v1810 = vadd.f32 %v1638, %v1809
        %v1811 = vpop.f32.mrf.mxu0
        %v1812 = vadd.f32 %v1638, %v1811
        %1813 = vdwg.mxu0
        %1814 = vmatpush.bf16.msra.mxu0 %v1767
        %1815 = vmatpush.bf16.msra.mxu0 %v1766
        %1816 = vmatpush.bf16.msra.mxu0 %v1765
        %1817 = vmatpush.bf16.msra.mxu0 %v1764
        %1818 = vmatpush.bf16.msra.mxu0 %v1763
        %1819 = vmatpush.bf16.msra.mxu0 %v1762
        %1820 = vmatpush.bf16.msra.mxu0 %v1761
        %1821 = vmatpush.bf16.msra.mxu0 %v1760
        %1822 = vmatmul.bf16.gmra.mxu0 %v1651
        %v1823 = vpop.f32.mrf.mxu0
        %v1824 = vadd.f32 %v1810, %v1823
        %v1825 = vpop.f32.mrf.mxu0
        %v1826 = vadd.f32 %v1812, %v1825
        %1827 = vdwg.mxu0
        %1828 = vmatpush.bf16.msra.mxu0 %v1775
        %1829 = vmatpush.bf16.msra.mxu0 %v1774
        %1830 = vmatpush.bf16.msra.mxu0 %v1773
        %1831 = vmatpush.bf16.msra.mxu0 %v1772
        %1832 = vmatpush.bf16.msra.mxu0 %v1771
        %1833 = vmatpush.bf16.msra.mxu0 %v1770
        %1834 = vmatpush.bf16.msra.mxu0 %v1769
        %1835 = vmatpush.bf16.msra.mxu0 %v1768
        %1836 = vmatmul.bf16.gmra.mxu0 %v1652
        %v1837 = vpop.f32.mrf.mxu0
        %v1838 = vadd.f32 %v1824, %v1837
        %v1839 = vpop.f32.mrf.mxu0
        %v1840 = vadd.f32 %v1826, %v1839
        %1841 = vdwg.mxu0
        %1842 = vst [vmem:[#allocation4] sm:$0xf] %v612
        %1843 = vst [vmem:[#allocation4 + $0xc] sm:$0xf] %v613
        %1844 = vst [vmem:[#allocation4 + $0x18] sm:$0xf] %v614
        %v1845 = vpack.c.bf16 %v1531, %v1531
        %v1846 = vpack.c.bf16 %v1533, %v1533
        %v1847 = vpack.c.bf16 %v1536, %v1536
        %1848 = vst [vmem:[#allocation4 + $0x4] sm:$0xf] %v1845
        %1849 = vst [vmem:[#allocation4 + $0x10] sm:$0xf] %v1846
        %1850 = vst [vmem:[#allocation4 + $0x1c] sm:$0xf] %v1847
        %v1851 = vpack.c.bf16 %v1566, %v1566
        %v1852 = vpack.c.bf16 %v1568, %v1568
        %v1853 = vpack.c.bf16 %v1571, %v1571
        %1854 = vst [vmem:[#allocation4 + $0x8] sm:$0xf] %v1851
        %1855 = vst [vmem:[#allocation4 + $0x14] sm:$0xf] %v1852
        %1856 = vst [vmem:[#allocation4 + $0x20] sm:$0xf] %v1853
        %v1857 = vld [vmem:[#allocation4] sm:$0xff]
        %v1858 = vld [vmem:[#allocation4 + $0x8] sm:$0xf]
        %v1859 = vld [vmem:[#allocation4 + $0xc] sm:$0xff]
        %v1860 = vld [vmem:[#allocation4 + $0x14] sm:$0xf]
        %v1861 = vld [vmem:[#allocation4 + $0x18] sm:$0xff]
        %v1862 = vld [vmem:[#allocation4 + $0x20] sm:$0xf]
        %v1863 = vld [vmem:[%s16] sm:$0xf]
        %v1864 = vld [vmem:[%s16 + $0x4] sm:$0xf]
        %v1865 = vld [vmem:[%s16 + $0x8] sm:$0xf]
        %v1866 = vld [vmem:[%s16 + $0xc] sm:$0xf]
        %v1867 = vld [vmem:[%s16 + $0x10] sm:$0xf]
        %v1868 = vld [vmem:[%s16 + $0x14] sm:$0xf]
        %v1869 = vld [vmem:[%s16 + $0x18] sm:$0xf]
        %v1870 = vld [vmem:[%s16 + $0x1c] sm:$0xf]
        %v1871 = vld [vmem:[%s16 + $0x20] sm:$0xf]
        %v1872 = vld [vmem:[%s16 + $0x24] sm:$0xf]
        %v1873 = vld [vmem:[%s16 + $0x28] sm:$0xf]
        %v1874 = vld [vmem:[%s16 + $0x2c] sm:$0xf]
        %v1875 = vld [vmem:[%s16 + $0x30] sm:$0xf]
        %v1876 = vld [vmem:[%s16 + $0x34] sm:$0xf]
        %v1877 = vld [vmem:[%s16 + $0x38] sm:$0xf]
        %v1878 = vld [vmem:[%s16 + $0x3c] sm:$0xf]
        %v1879 = vld [vmem:[%s16 + $0x40] sm:$0xf]
        %v1880 = vld [vmem:[%s16 + $0x44] sm:$0xf]
        %v1881 = vld [vmem:[%s16 + $0x48] sm:$0xf]
        %v1882 = vld [vmem:[%s16 + $0x4c] sm:$0xf]
        %v1883 = vld [vmem:[%s16 + $0x50] sm:$0xf]
        %v1884 = vld [vmem:[%s16 + $0x54] sm:$0xf]
        %v1885 = vld [vmem:[%s16 + $0x58] sm:$0xf]
        %v1886 = vld [vmem:[%s16 + $0x5c] sm:$0xf]
        %v1887 = vld [vmem:[%s16 + $0x60] sm:$0xf]
        %v1888 = vld [vmem:[%s16 + $0x64] sm:$0xf]
        %v1889 = vld [vmem:[%s16 + $0x68] sm:$0xf]
        %v1890 = vld [vmem:[%s16 + $0x6c] sm:$0xf]
        %v1891 = vld [vmem:[%s16 + $0x70] sm:$0xf]
        %v1892 = vld [vmem:[%s16 + $0x74] sm:$0xf]
        %v1893 = vld [vmem:[%s16 + $0x78] sm:$0xf]
        %v1894 = vld [vmem:[%s16 + $0x7c] sm:$0xf]
        %v1895 = vld [vmem:[%s16 + $0x80] sm:$0xf]
        %v1896 = vld [vmem:[%s16 + $0x84] sm:$0xf]
        %v1897 = vld [vmem:[%s16 + $0x88] sm:$0xf]
        %v1898 = vld [vmem:[%s16 + $0x8c] sm:$0xf]
        %v1899 = vld [vmem:[%s16 + $0x90] sm:$0xf]
        %v1900 = vld [vmem:[%s16 + $0x94] sm:$0xf]
        %v1901 = vld [vmem:[%s16 + $0x98] sm:$0xf]
        %v1902 = vld [vmem:[%s16 + $0x9c] sm:$0xf]
        %v1903 = vld [vmem:[%s16 + $0xa0] sm:$0xf]
        %v1904 = vld [vmem:[%s16 + $0xa4] sm:$0xf]
        %v1905 = vld [vmem:[%s16 + $0xa8] sm:$0xf]
        %v1906 = vld [vmem:[%s16 + $0xac] sm:$0xf]
        %v1907 = vld [vmem:[%s16 + $0xb0] sm:$0xf]
        %v1908 = vld [vmem:[%s16 + $0xb4] sm:$0xf]
        %v1909 = vld [vmem:[%s16 + $0xb8] sm:$0xf]
        %v1910 = vld [vmem:[%s16 + $0xbc] sm:$0xf]
        %v1911 = vld [vmem:[%s17] sm:$0x1]
        %v1913 = vperm.slane %v1911, 0
        %v1921 = vunpack.c.l.b16 %v1857
        %v1922 = vunpack.c.h.b16 %v1857
        %v1923 = vunpack.c.l.b16 %v1858
        %v1924 = vunpack.c.l.b16 %v1859
        %v1925 = vunpack.c.h.b16 %v1859
        %v1926 = vunpack.c.l.b16 %v1860
        %v1927 = vunpack.c.l.b16 %v1861
        %v1928 = vunpack.c.h.b16 %v1861
        %v1929 = vunpack.c.l.b16 %v1862
        %v1930 = vpack.c.b16 %v1924, %v1921
        %v1931 = vpack.c.b16 %v1925, %v1922
        %v1932 = vpack.c.b16 %v1926, %v1923
        %v1933 = vpack.c.b16 %v1927, %v1927
        %v1934 = vpack.c.b16 %v1928, %v1928
        %v1935 = vpack.c.b16 %v1929, %v1929
        %v1990 = vunpack.c.l.b16 %v1863
        %v1991 = vunpack.c.l.b16 %v1864
        %v1992 = vunpack.c.l.b16 %v1865
        %v1993 = vunpack.c.l.b16 %v1866
        %v1994 = vunpack.c.l.b16 %v1867
        %v1995 = vunpack.c.l.b16 %v1868
        %v1996 = vunpack.c.l.b16 %v1869
        %v1997 = vunpack.c.l.b16 %v1870
        %v1998 = vunpack.c.l.b16 %v1871
        %v1999 = vunpack.c.l.b16 %v1872
        %v2000 = vunpack.c.l.b16 %v1873
        %v2001 = vunpack.c.l.b16 %v1874
        %v2002 = vunpack.c.l.b16 %v1875
        %v2003 = vunpack.c.l.b16 %v1876
        %v2004 = vunpack.c.l.b16 %v1877
        %v2005 = vunpack.c.l.b16 %v1878
        %v2006 = vunpack.c.l.b16 %v1879
        %v2007 = vunpack.c.l.b16 %v1880
        %v2008 = vunpack.c.l.b16 %v1881
        %v2009 = vunpack.c.l.b16 %v1882
        %v2010 = vunpack.c.l.b16 %v1883
        %v2011 = vunpack.c.l.b16 %v1884
        %v2012 = vunpack.c.l.b16 %v1885
        %v2013 = vunpack.c.l.b16 %v1886
        %v2014 = vunpack.c.l.b16 %v1887
        %v2015 = vunpack.c.l.b16 %v1888
        %v2016 = vunpack.c.l.b16 %v1889
        %v2017 = vunpack.c.l.b16 %v1890
        %v2018 = vunpack.c.l.b16 %v1891
        %v2019 = vunpack.c.l.b16 %v1892
        %v2020 = vunpack.c.l.b16 %v1893
        %v2021 = vunpack.c.l.b16 %v1894
        %v2022 = vunpack.c.l.b16 %v1895
        %v2023 = vunpack.c.l.b16 %v1896
        %v2024 = vunpack.c.l.b16 %v1897
        %v2025 = vunpack.c.l.b16 %v1898
        %v2026 = vunpack.c.l.b16 %v1899
        %v2027 = vunpack.c.l.b16 %v1900
        %v2028 = vunpack.c.l.b16 %v1901
        %v2029 = vunpack.c.l.b16 %v1902
        %v2030 = vunpack.c.l.b16 %v1903
        %v2031 = vunpack.c.l.b16 %v1904
        %v2032 = vunpack.c.l.b16 %v1905
        %v2033 = vunpack.c.l.b16 %v1906
        %v2034 = vunpack.c.l.b16 %v1907
        %v2035 = vunpack.c.l.b16 %v1908
        %v2036 = vunpack.c.l.b16 %v1909
        %v2037 = vunpack.c.l.b16 %v1910
        %v2038 = vpack.c.b16 %v1991, %v1990
        %v2039 = vpack.c.b16 %v1993, %v1992
        %v2040 = vpack.c.b16 %v1995, %v1994
        %v2041 = vpack.c.b16 %v1997, %v1996
        %v2042 = vpack.c.b16 %v1999, %v1998
        %v2043 = vpack.c.b16 %v2001, %v2000
        %v2044 = vpack.c.b16 %v2003, %v2002
        %v2045 = vpack.c.b16 %v2005, %v2004
        %v2046 = vpack.c.b16 %v2007, %v2006
        %v2047 = vpack.c.b16 %v2009, %v2008
        %v2048 = vpack.c.b16 %v2011, %v2010
        %v2049 = vpack.c.b16 %v2013, %v2012
        %v2050 = vpack.c.b16 %v2015, %v2014
        %v2051 = vpack.c.b16 %v2017, %v2016
        %v2052 = vpack.c.b16 %v2019, %v2018
        %v2053 = vpack.c.b16 %v2021, %v2020
        %v2054 = vpack.c.b16 %v2023, %v2022
        %v2055 = vpack.c.b16 %v2025, %v2024
        %v2056 = vpack.c.b16 %v2027, %v2026
        %v2057 = vpack.c.b16 %v2029, %v2028
        %v2058 = vpack.c.b16 %v2031, %v2030
        %v2059 = vpack.c.b16 %v2033, %v2032
        %v2060 = vpack.c.b16 %v2035, %v2034
        %v2061 = vpack.c.b16 %v2037, %v2036
        %2086 = vmatpush.bf16.msra.mxu0 %v2045
        %2087 = vmatpush.bf16.msra.mxu0 %v2044
        %2088 = vmatpush.bf16.msra.mxu0 %v2043
        %2089 = vmatpush.bf16.msra.mxu0 %v2042
        %2090 = vmatpush.bf16.msra.mxu0 %v2041
        %2091 = vmatpush.bf16.msra.mxu0 %v2040
        %2092 = vmatpush.bf16.msra.mxu0 %v2039
        %2093 = vmatpush.bf16.msra.mxu0 %v2038
        %2094 = vmatmul.bf16.gmra.mxu0 %v1930
        %v2095 = vpop.f32.mrf.mxu0
        %v2096 = vadd.f32 %v1913, %v2095
        %v2097 = vpop.f32.mrf.mxu0
        %v2098 = vadd.f32 %v1913, %v2097
        %2099 = vmatmul.bf16.gmra.mxu0 %v1933
        %v2100 = vpop.f32.mrf.mxu0
        %v2101 = vadd.f32 %v1913, %v2100
        %v2102 = vpop.f32.mrf.mxu0
        %2103 = vdwg.mxu0
        %2104 = vmatpush.bf16.msra.mxu0 %v2053
        %2105 = vmatpush.bf16.msra.mxu0 %v2052
        %2106 = vmatpush.bf16.msra.mxu0 %v2051
        %2107 = vmatpush.bf16.msra.mxu0 %v2050
        %2108 = vmatpush.bf16.msra.mxu0 %v2049
        %2109 = vmatpush.bf16.msra.mxu0 %v2048
        %2110 = vmatpush.bf16.msra.mxu0 %v2047
        %2111 = vmatpush.bf16.msra.mxu0 %v2046
        %2112 = vmatmul.bf16.gmra.mxu0 %v1931
        %v2113 = vpop.f32.mrf.mxu0
        %v2114 = vadd.f32 %v2096, %v2113
        %v2115 = vpop.f32.mrf.mxu0
        %v2116 = vadd.f32 %v2098, %v2115
        %2117 = vmatmul.bf16.gmra.mxu0 %v1934
        %v2118 = vpop.f32.mrf.mxu0
        %v2119 = vadd.f32 %v2101, %v2118
        %v2120 = vpop.f32.mrf.mxu0
        %2121 = vdwg.mxu0
        %2122 = vmatpush.bf16.msra.mxu0 %v2061
        %2123 = vmatpush.bf16.msra.mxu0 %v2060
        %2124 = vmatpush.bf16.msra.mxu0 %v2059
        %2125 = vmatpush.bf16.msra.mxu0 %v2058
        %2126 = vmatpush.bf16.msra.mxu0 %v2057
        %2127 = vmatpush.bf16.msra.mxu0 %v2056
        %2128 = vmatpush.bf16.msra.mxu0 %v2055
        %2129 = vmatpush.bf16.msra.mxu0 %v2054
        %2130 = vmatmul.bf16.gmra.mxu0 %v1932
        %v2131 = vpop.f32.mrf.mxu0
        %v2132 = vadd.f32 %v2114, %v2131
        %v2133 = vpop.f32.mrf.mxu0
        %v2134 = vadd.f32 %v2116, %v2133
        %2135 = vmatmul.bf16.gmra.mxu0 %v1935
        %v2136 = vpop.f32.mrf.mxu0
        %v2137 = vadd.f32 %v2119, %v2136
        %v2138 = vpop.f32.mrf.mxu0
        %2139 = vdwg.mxu0
        %2140 = vst [vmem:[#allocation3] sm:$0xff] %v1838
        %2141 = vst [vmem:[#allocation3 + $0x8] sm:$0xff] %v1840
        %2142 = vst [vmem:[#allocation2] sm:$0xff] %v2132
        %2143 = vst [vmem:[#allocation2 + $0x8] sm:$0xff] %v2134
        %2144 = vst [vmem:[#allocation2 + $0x10] sm:$0xff] %v2137
        %2145 = vst [vmem:[%s591] sm:$0xff] %v1838
        %2146 = vst [vmem:[%s591 + $0x8] sm:$0xff] %v1840
        %2147 = vst [vmem:[%s584] sm:$0xff] %v2132
        %2148 = vst [vmem:[%s584 + $0x8] sm:$0xff] %v2134
        %2149 = vst [vmem:[%s584 + $0x10] sm:$0xff] %v2137
        %s2150 = sand.u32 %s423, 1
        %s2151 = scalar_lea.sflag [#allocation7], %s2150
        %s2152 = sand.u32 %s423, 1
        %s2153 = smul.addr %s2152, 24
        %s2154 = scalar_lea.vmem [#allocation6], %s2153
        %s2155 = sand.u32 %s449, 1
        %s2156 = scalar_lea.sflag [#allocation9], %s2155
        %s2157 = sand.u32 %s449, 1
        %s2158 = smul.addr %s2157, 16
        %s2159 = scalar_lea.vmem [#allocation8], %s2158
        // Predicated region
        $region97: #{_gcn_vcg_jit.1} parent=91 // pred_check
          %p2160 = pneg %p433
        $region98: #{_gcn_vcg_jit.1} parent=91 // pred_check_branch
          %2162 = sbr.rel (%p2160) target = $region100
        $region99: #{_gcn_vcg_jit.1} parent=91 // pred_region
          %2164 = vsyncadd %s2151, 0
          %s2165 = smul.addr %s37, 3
          %s2166 = smul.addr %s2165, 8
          %s2167 = scalar_lea.hbm %s18, %s2166
          %s2168 = sshll.u32 %s2154, 4
          %s2169 = int_to_ptr.vmem [resolvable:$true] %s2168
          %s2170 = sshll.u32 %s2167, 4
          %s2171 = int_to_ptr.hbm [resolvable:$true] %s2170
          %2176 = dma.vmem_to_hbm [thread:$0]  %s2169, 384, %s2171, %s2151, 128, 128, 8
        $region100: #{_gcn_vcg_jit.1} parent=91 // pred_fallthru
          _
        // Predicated region
        $region101: #{_gcn_vcg_jit.1} parent=91 // pred_check
          %p2177 = pneg %p459
        $region102: #{_gcn_vcg_jit.1} parent=91 // pred_check_branch
          %2179 = sbr.rel (%p2177) target = $region104
        $region103: #{_gcn_vcg_jit.1} parent=91 // pred_region
          %2181 = vsyncadd %s2156, 0
          %s2182 = smul.addr %s37, 2
          %s2183 = smul.addr %s2182, 8
          %s2184 = scalar_lea.hbm %s19, %s2183
          %s2185 = sshll.u32 %s2159, 4
          %s2186 = int_to_ptr.vmem [resolvable:$true] %s2185
          %s2187 = sshll.u32 %s2184, 4
          %s2188 = int_to_ptr.hbm [resolvable:$true] %s2187
          %2193 = dma.vmem_to_hbm [thread:$0]  %s2186, 256, %s2188, %s2156, 128, 128, 8
        $region104: #{_gcn_vcg_jit.1} parent=91 // pred_fallthru
          _
      $region92: #{_gcn_vcg_jit.1} parent=5 // pred_fallthru
        _
      %p2194 = scmp.le.s32.totalorder 2, %s32
      // Predicated region
      $region105: #{_gcn_vcg_jit.1} parent=5 // pred_check
        %p2195 = pneg %p2194
      $region106: #{_gcn_vcg_jit.1} parent=5 // pred_check_branch
        %2197 = sbr.rel (%p2195) target = $region108
      $region107: #{_gcn_vcg_jit.1} parent=5 // pred_region
        %s2198 = ssub.s32 %s32, 2
        // Predicated region
        $region109: #{_gcn_vcg_jit.1} parent=107 // pred_check
          %p2199 = pneg %p439
        $region110: #{_gcn_vcg_jit.1} parent=107 // pred_check_branch
          %2201 = sbr.rel (%p2199) target = $region112
        $region111: #{_gcn_vcg_jit.1} parent=107 // pred_region
          %s2202 = sand.u32 %s424, 1
          %s2203 = scalar_lea.sflag [#allocation7], %s2202
          %s2204 = sand.u32 %s424, 1
          %s2205 = smul.addr %s2204, 24
          %s2206 = scalar_lea.vmem [#allocation6], %s2205
          %2208 = dma.done %s2203, 384
        $region112: #{_gcn_vcg_jit.1} parent=107 // pred_fallthru
          _
        // Predicated region
        $region113: #{_gcn_vcg_jit.1} parent=107 // pred_check
          %p2209 = pneg %p465
        $region114: #{_gcn_vcg_jit.1} parent=107 // pred_check_branch
          %2211 = sbr.rel (%p2209) target = $region116
        $region115: #{_gcn_vcg_jit.1} parent=107 // pred_region
          %s2212 = sand.u32 %s450, 1
          %s2213 = scalar_lea.sflag [#allocation9], %s2212
          %s2214 = sand.u32 %s450, 1
          %s2215 = smul.addr %s2214, 16
          %s2216 = scalar_lea.vmem [#allocation8], %s2215
          %2218 = dma.done %s2213, 256
        $region116: #{_gcn_vcg_jit.1} parent=107 // pred_fallthru
          _
      $region108: #{_gcn_vcg_jit.1} parent=5 // pred_fallthru
        _
    $region6: #{_gcn_vcg_jit.1} parent=1 // loop_footer
      %s36 = sadd.s32 1, %s32
    $region7: #{_gcn_vcg_jit.1} parent=1 // loop_footer_branch
      %31 = sbr.rel target = $region3
    $region8: #{_gcn_vcg_jit.1} parent=1 // loop_exit
      _
    %2219 = vsyncpa [#allocation7], 1
    %s2220 = scalar_lea.sflag [#allocation7], 1
    %2221 = vsyncpa %s2220, 1
    %2222 = vsyncpa [#allocation9], 1
    %s2223 = scalar_lea.sflag [#allocation9], 1
    %2224 = vsyncpa %s2223, 1

</llo_original>
